<compile_context>
chip_gen: v5e
topology: v5e:2x2
jax: 0.10.0
libtpu: 0.0.40
codegen_flags: <defaults>
</compile_context>

<pallas_src>
import functools

import jax
import jax.numpy as jnp
from jax import lax
from jax.experimental import pallas as pl
from jax.experimental.pallas import tpu as pltpu

_LANE = 128
_SUBLANE = 8


def _round_up(x, m):
    return (x + m - 1) // m * m


def _char_rnn_kernel(ids_ref, h0_ref, wemb_ref, bih_ref, whh_ref, bhh_ref,
                     wdec_ref, bdec_ref, logits_ref, hout_ref,
                     h_carry, gi_hist, h_hist, *, tb, t_total):
    """Tb GRU steps per grid iteration; weights VMEM-resident; decoder deferred."""
    blk = pl.program_id(0)
    bp, hp = h_carry.shape           # padded batch (8), padded hidden (128)
    vp = wemb_ref.shape[0]           # padded vocab (128)

    @pl.when(blk == 0)
    def _():
        h_carry[...] = h0_ref[...]

    # ---- OFF the recurrent critical path: gi for all Tb steps in one matmul ----
    # one-hot (Tb*Bp, Vp) @ emb-folded input weight (Vp, 3Hp)  (+ b_ih)
    tok = ids_ref[...]                                            # (Tb*Bp, 1) int32
    col = lax.broadcasted_iota(jnp.int32, (tb * bp, vp), 1)
    onehot = (col == tok).astype(jnp.float32)                     # vectorized, no per-b loop
    gi_hist[...] = (jnp.dot(onehot, wemb_ref[...],
                            preferred_element_type=jnp.float32) + bih_ref[...])

    w_hh = whh_ref[...]              # (Hp, 3Hp) hoisted out of the loop
    b_hh = bhh_ref[...]              # (1, 3Hp)

    def step(s, h):
        row = pl.multiple_of(s * bp, bp)
        gi = gi_hist[pl.ds(row, bp), :]                           # (Bp, 3Hp)
        gh = jnp.dot(h, w_hh, preferred_element_type=jnp.float32) + b_hh
        # PyTorch GRU gate order: r, z, n (each gate in its own 128-lane block)
        r = jax.nn.sigmoid(gi[:, 0 * hp:1 * hp] + gh[:, 0 * hp:1 * hp])
        z = jax.nn.sigmoid(gi[:, 1 * hp:2 * hp] + gh[:, 1 * hp:2 * hp])
        n = jnp.tanh(gi[:, 2 * hp:3 * hp] + r * gh[:, 2 * hp:3 * hp])
        h_new = (1.0 - z) * n + z * h
        if t_total % tb != 0:                                     # mask padded tail steps
            valid = (blk * tb + s) < t_total
            h_new = jnp.where(valid, h_new, h)
        h_hist[pl.ds(row, bp), :] = h_new
        return h_new

    h_final = lax.fori_loop(0, tb, step, h_carry[...], unroll=True)
    h_carry[...] = h_final
    hout_ref[...] = h_final

    # ---- deferred decoder: one large lane-dense matmul after the recurrence ----
    logits_ref[...] = (jnp.dot(h_hist[...], wdec_ref[...],
                               preferred_element_type=jnp.float32) + bdec_ref[...])


def prepare_params(params):
    """One-time packing: pad/transpose weights and fold the embedding into w_ih."""
    emb = params["embedding"].astype(jnp.float32)     # (V, H)
    w_ih = params["w_ih"].astype(jnp.float32)         # (3H, H), gates [r, z, n]
    w_hh = params["w_hh"].astype(jnp.float32)         # (3H, H)
    b_ih = params["b_ih"].astype(jnp.float32)         # (3H,)
    b_hh = params["b_hh"].astype(jnp.float32)         # (3H,)
    w_dec = params["w_dec"].astype(jnp.float32)       # (O, H)
    b_dec = params["b_dec"].astype(jnp.float32)       # (O,)

    V, H = emb.shape
    O = w_dec.shape[0]
    Hp, Vp, Op = _round_up(H, _LANE), _round_up(V, _LANE), _round_up(O, _LANE)

    # gi[t] = onehot(tok_t) @ (emb @ w_ih^T); fold done once here, in f32.
    emb_gates = emb @ w_ih.T                           # (V, 3H)

    def pack_cols(m, src_h):  # (rows, 3*src_h) -> (rows, 3*Hp), one lane block per gate
        rows = m.shape[0]
        out = jnp.zeros((rows, 3 * Hp), jnp.float32)
        for k in range(3):
            out = out.at[:, k * Hp:k * Hp + src_h].set(m[:, k * src_h:(k + 1) * src_h])
        return out

    w_emb_gates = jnp.zeros((Vp, 3 * Hp), jnp.float32).at[:V, :].set(pack_cols(emb_gates, H))
    w_hh_t = jnp.zeros((Hp, 3 * Hp), jnp.float32).at[:H, :].set(pack_cols(w_hh.T, H))
    b_ih_p = pack_cols(b_ih[None, :], H)               # (1, 3Hp)
    b_hh_p = pack_cols(b_hh[None, :], H)               # (1, 3Hp)
    w_dec_t = jnp.zeros((Hp, Op), jnp.float32).at[:H, :O].set(w_dec.T)
    b_dec_p = jnp.zeros((1, Op), jnp.float32).at[0, :O].set(b_dec)

    return {
        "w_emb_gates": w_emb_gates, "b_ih": b_ih_p,
        "w_hh_t": w_hh_t, "b_hh": b_hh_p,
        "w_dec_t": w_dec_t, "b_dec": b_dec_p,
        "dims": {"H": H, "V": V, "O": O, "Hp": Hp, "Vp": Vp, "Op": Op},
    }


def char_rnn_forward_seq(token_ids, hidden, packed, *, block_t=128):
    """Run the GRU cell over a whole (T, B) sequence with a time-blocked kernel.

    token_ids: (T, B) int; hidden: (1, B, H) float32; packed from prepare_params().
    Returns (logits (T, B, O), final hidden (1, B, H)); step t matches the
    PyTorch module's forward() output at that step.
    """
    d = packed["dims"]
    H, V, O = d["H"], d["V"], d["O"]
    Hp, Vp, Op = d["Hp"], d["Vp"], d["Op"]

    T, B = token_ids.shape
    Bp = _round_up(max(B, 1), _SUBLANE)

    tb = max(1, min(T, block_t))          # steps per grid iteration
    num_blocks = -(-T // tb)
    Tp = num_blocks * tb

    ids = jnp.zeros((Tp, Bp), jnp.int32).at[:T, :B].set(token_ids.astype(jnp.int32))
    ids = ids.reshape(num_blocks, tb * Bp, 1)

    h0_p = jnp.zeros((Bp, Hp), jnp.float32).at[:B, :H].set(hidden[0].astype(jnp.float32))

    grid_spec = pltpu.PrefetchScalarGridSpec(
        num_scalar_prefetch=0,
        grid=(num_blocks,),
        in_specs=[
            pl.BlockSpec((None, tb * Bp, 1), lambda blk: (blk, 0, 0)),   # token ids (this block)
            pl.BlockSpec((Bp, Hp), lambda blk: (0, 0)),                  # initial hidden
            pl.BlockSpec((Vp, 3 * Hp), lambda blk: (0, 0)),              # emb-folded input weight
            pl.BlockSpec((1, 3 * Hp), lambda blk: (0, 0)),               # b_ih
            pl.BlockSpec((Hp, 3 * Hp), lambda blk: (0, 0)),              # w_hh^T
            pl.BlockSpec((1, 3 * Hp), lambda blk: (0, 0)),               # b_hh
            pl.BlockSpec((Hp, Op), lambda blk: (0, 0)),                  # decoder weight^T
            pl.BlockSpec((1, Op), lambda blk: (0, 0)),                   # decoder bias
        ],
        out_specs=(
            pl.BlockSpec((None, tb * Bp, Op), lambda blk: (blk, 0, 0)),  # logits (this block)
            pl.BlockSpec((Bp, Hp), lambda blk: (0, 0)),                  # final hidden
        ),
        scratch_shapes=[
            pltpu.VMEM((Bp, Hp), jnp.float32),            # hidden carry across blocks
            pltpu.VMEM((tb * Bp, 3 * Hp), jnp.float32),   # precomputed gi for all steps
            pltpu.VMEM((tb * Bp, Hp), jnp.float32),       # h history for deferred decoder
        ],
    )

    logits_p, h_final_p = pl.pallas_call(
        functools.partial(_char_rnn_kernel, tb=tb, t_total=T),
        grid_spec=grid_spec,
        out_shape=(
            jax.ShapeDtypeStruct((num_blocks, tb * Bp, Op), jnp.float32),
            jax.ShapeDtypeStruct((Bp, Hp), jnp.float32),
        ),
        compiler_params=pltpu.CompilerParams(
            dimension_semantics=("arbitrary",)),   # recurrence: sequential time axis
    )(ids, h0_p, packed["w_emb_gates"], packed["b_ih"], packed["w_hh_t"],
      packed["b_hh"], packed["w_dec_t"], packed["b_dec"])

    logits = logits_p.reshape(Tp, Bp, Op)[:T, :B, :O]
    hidden_out = h_final_p[:B, :H][None, :, :]
    return logits, hidden_out


def char_rnn_forward(input_ids, hidden, packed):
    """Single-step forward matching CharRNN.forward(input, hidden).

    input_ids: (B,) int; hidden: (1, B, H). Returns (output (B, O), hidden (1, B, H)).
    """
    logits, h = char_rnn_forward_seq(input_ids[None, :], hidden, packed)
    return logits[0], h


def init_params(key, input_size, hidden_size, output_size):
    ks = jax.random.split(key, 7)
    scale = 0.1
    return {
        "embedding": scale * jax.random.normal(ks[0], (input_size, hidden_size), jnp.float32),
        "w_ih": scale * jax.random.normal(ks[1], (3 * hidden_size, hidden_size), jnp.float32),
        "w_hh": scale * jax.random.normal(ks[2], (3 * hidden_size, hidden_size), jnp.float32),
        "b_ih": scale * jax.random.normal(ks[3], (3 * hidden_size,), jnp.float32),
        "b_hh": scale * jax.random.normal(ks[4], (3 * hidden_size,), jnp.float32),
        "w_dec": scale * jax.random.normal(ks[5], (output_size, hidden_size), jnp.float32),
        "b_dec": scale * jax.random.normal(ks[6], (output_size,), jnp.float32),
    }


def _reference_seq(token_ids, hidden0, params):
    """Pure-JAX per-step GRU + decoder reference (PyTorch semantics)."""
    H = params["embedding"].shape[1]
    h = hidden0[0]
    outs = []
    for t in range(token_ids.shape[0]):
        x = jnp.take(params["embedding"], token_ids[t], axis=0)
        gi = x @ params["w_ih"].T + params["b_ih"]
        gh = h @ params["w_hh"].T + params["b_hh"]
        r = jax.nn.sigmoid(gi[:, :H] + gh[:, :H])
        z = jax.nn.sigmoid(gi[:, H:2 * H] + gh[:, H:2 * H])
        n = jnp.tanh(gi[:, 2 * H:] + r * gh[:, 2 * H:])
        h = (1.0 - z) * n + z * h
        outs.append(h @ params["w_dec"].T + params["b_dec"])
    return jnp.stack(outs, axis=0), h[None, :, :]


if __name__ == "__main__":
    INPUT_SIZE = 16    # vocab size
    HIDDEN_SIZE = 32
    OUTPUT_SIZE = 16
    BATCH = 2
    SEQ_LEN = 8

    key = jax.random.PRNGKey(0)
    k_param, k_ids = jax.random.split(key)

    params = init_params(k_param, INPUT_SIZE, HIDDEN_SIZE, OUTPUT_SIZE)
    packed = prepare_params(params)            # one-time packing, off the call path

    token_ids = jax.random.randint(k_ids, (SEQ_LEN, BATCH), 0, INPUT_SIZE, dtype=jnp.int32)
    hidden0 = jnp.zeros((1, BATCH, HIDDEN_SIZE), jnp.float32)   # init_hidden()

    # Whole-sequence kernel: one pallas_call, single time-blocked grid step.
    logits, hidden_T = char_rnn_forward_seq(token_ids, hidden0, packed)
    jax.block_until_ready((logits, hidden_T))

    # Single-step call (exact module forward() semantics).
    out_step0, hidden_step0 = char_rnn_forward(token_ids[0], hidden0, packed)
    jax.block_until_ready((out_step0, hidden_step0))

    # Pure-JAX reference.
    ref_logits, ref_hidden_T = _reference_seq(token_ids, hidden0, params)

    assert logits.shape == (SEQ_LEN, BATCH, OUTPUT_SIZE)
    assert hidden_T.shape == (1, BATCH, HIDDEN_SIZE)
    assert out_step0.shape == (BATCH, OUTPUT_SIZE)
    assert hidden_step0.shape == (1, BATCH, HIDDEN_SIZE)

    # Tolerance accommodates TPU matmul precision differences between the
    # padded/fused kernel dots and the plain-JAX reference dots.
    assert jnp.allclose(logits, ref_logits, atol=1e-3, rtol=1e-3)
    assert jnp.allclose(hidden_T, ref_hidden_T, atol=1e-3, rtol=1e-3)
    assert jnp.allclose(out_step0, ref_logits[0], atol=1e-3, rtol=1e-3)
    assert jnp.allclose(hidden_step0, ref_hidden_T if SEQ_LEN == 1 else
                        _reference_seq(token_ids[:1], hidden0, params)[1],
                        atol=1e-3, rtol=1e-3)

    print("KERNEL_OK")
</pallas_src>

<mosaic_0001>
module attributes {stable_mosaic.version = 11 : i64} {
  func.func @_char_rnn_kernel(%arg0: i32, %arg1: memref<1x64x1xi32, #tpu.memory_space<vmem>>, %arg2: memref<8x128xf32, #tpu.memory_space<vmem>>, %arg3: memref<128x384xf32, #tpu.memory_space<vmem>>, %arg4: memref<1x384xf32, #tpu.memory_space<vmem>>, %arg5: memref<128x384xf32, #tpu.memory_space<vmem>>, %arg6: memref<1x384xf32, #tpu.memory_space<vmem>>, %arg7: memref<128x128xf32, #tpu.memory_space<vmem>>, %arg8: memref<1x128xf32, #tpu.memory_space<vmem>>, %arg9: memref<1x64x128xf32, #tpu.memory_space<vmem>>, %arg10: memref<8x128xf32, #tpu.memory_space<vmem>>, %arg11: memref<8x128xf32, #tpu.memory_space<vmem>>, %arg12: memref<64x384xf32, #tpu.memory_space<vmem>>, %arg13: memref<64x128xf32, #tpu.memory_space<vmem>>) attributes {dimension_semantics = [#tpu.dimension_semantics<arbitrary>], iteration_bounds = array<i64: 1>, scalar_prefetch = 0 : i64, scratch_operands = 3 : i64, tpu.core_type = #tpu.core_type<tc>, window_params = [{transform_indices = @transform_0, window_bounds = array<i64: 1, 64, 1>}, {pipeline_mode = #tpu.pipeline_mode<synchronous>, transform_indices = @transform_1, window_bounds = array<i64: 8, 128>}, {pipeline_mode = #tpu.pipeline_mode<synchronous>, transform_indices = @transform_2, window_bounds = array<i64: 128, 384>}, {pipeline_mode = #tpu.pipeline_mode<synchronous>, transform_indices = @transform_3, window_bounds = array<i64: 1, 384>}, {pipeline_mode = #tpu.pipeline_mode<synchronous>, transform_indices = @transform_4, window_bounds = array<i64: 128, 384>}, {pipeline_mode = #tpu.pipeline_mode<synchronous>, transform_indices = @transform_5, window_bounds = array<i64: 1, 384>}, {pipeline_mode = #tpu.pipeline_mode<synchronous>, transform_indices = @transform_6, window_bounds = array<i64: 128, 128>}, {pipeline_mode = #tpu.pipeline_mode<synchronous>, transform_indices = @transform_7, window_bounds = array<i64: 1, 128>}, {transform_indices = @transform_8, window_bounds = array<i64: 1, 64, 128>}, {pipeline_mode = #tpu.pipeline_mode<synchronous>, transform_indices = @transform_9, window_bounds = array<i64: 8, 128>}]} {
    %c0_i32 = arith.constant 0 : i32
    %0 = arith.cmpi eq, %arg0, %c0_i32 : i32
    %1 = arith.extui %0 : i1 to i32
    %c0_i32_0 = arith.constant 0 : i32
    %2 = arith.cmpi ne, %1, %c0_i32_0 : i32
    scf.if %2 {
      %c0_86 = arith.constant 0 : index
      %c0_87 = arith.constant 0 : index
      %310 = vector.load %arg2[%c0_86, %c0_87] : memref<8x128xf32, #tpu.memory_space<vmem>>, vector<8x128xf32>
      %c0_88 = arith.constant 0 : index
      %c0_89 = arith.constant 0 : index
      %311 = vector.load %arg11[%c0_88, %c0_89] : memref<8x128xf32, #tpu.memory_space<vmem>>, vector<8x128xf32>
      tpu.vector_store %arg11[%c0_88, %c0_89], %310 {strides = array<i32>} : memref<8x128xf32, #tpu.memory_space<vmem>>, vector<8x128xf32>,
    } else {
    }
    %c0 = arith.constant 0 : index
    %c0_1 = arith.constant 0 : index
    %c0_2 = arith.constant 0 : index
    %3 = vector.load %arg1[%c0, %c0_1, %c0_2] : memref<1x64x1xi32, #tpu.memory_space<vmem>>, vector<1x64x1xi32>
    %4 = vector.shape_cast %3 : vector<1x64x1xi32> to vector<64x1xi32>
    %5 = tpu.iota {dimensions = array<i32: 1>} : vector<64x128xi32>
    %6 = vector.broadcast %4 : vector<64x1xi32> to vector<64x128xi32>
    %7 = arith.cmpi eq, %5, %6 : vector<64x128xi32>
    %8 = arith.extui %7 : vector<64x128xi1> to vector<64x128xi32>
    %9 = arith.sitofp %8 : vector<64x128xi32> to vector<64x128xf32>
    %c0_3 = arith.constant 0 : index
    %c0_4 = arith.constant 0 : index
    %10 = vector.load %arg3[%c0_3, %c0_4] : memref<128x384xf32, #tpu.memory_space<vmem>>, vector<128x384xf32>
    %cst = arith.constant dense<0.000000e+00> : vector<64x384xf32>
    %11 = tpu.matmul %9, %10, %cst {dimension_numbers = #tpu.dot_dimension_numbers<[1], [0], [0], [1], [0, 0, 1, 1], [], []>} : vector<64x128xf32>, vector<128x384xf32>, vector<64x384xf32> -> vector<64x384xf32>
    %c0_5 = arith.constant 0 : index
    %c0_6 = arith.constant 0 : index
    %12 = vector.load %arg4[%c0_5, %c0_6] : memref<1x384xf32, #tpu.memory_space<vmem>>, vector<1x384xf32>
    %13 = vector.broadcast %12 : vector<1x384xf32> to vector<64x384xf32>
    %14 = arith.addf %11, %13 : vector<64x384xf32>
    %c0_7 = arith.constant 0 : index
    %c0_8 = arith.constant 0 : index
    %15 = vector.load %arg12[%c0_7, %c0_8] : memref<64x384xf32, #tpu.memory_space<vmem>>, vector<64x384xf32>
    tpu.vector_store %arg12[%c0_7, %c0_8], %14 {strides = array<i32>} : memref<64x384xf32, #tpu.memory_space<vmem>>, vector<64x384xf32>,
    %c0_9 = arith.constant 0 : index
    %c0_10 = arith.constant 0 : index
    %16 = vector.load %arg5[%c0_9, %c0_10] : memref<128x384xf32, #tpu.memory_space<vmem>>, vector<128x384xf32>
    %c0_11 = arith.constant 0 : index
    %c0_12 = arith.constant 0 : index
    %17 = vector.load %arg6[%c0_11, %c0_12] : memref<1x384xf32, #tpu.memory_space<vmem>>, vector<1x384xf32>
    %c0_13 = arith.constant 0 : index
    %c0_14 = arith.constant 0 : index
    %18 = vector.load %arg11[%c0_13, %c0_14] : memref<8x128xf32, #tpu.memory_space<vmem>>, vector<8x128xf32>
    %c0_i32_15 = arith.constant 0 : i32
    %c8_i32 = arith.constant 8 : i32
    %19 = arith.muli %c0_i32_15, %c8_i32 : i32
    %20 = tpu.assume_multiple %19, 8 : i32
    %21 = arith.index_cast %20 : i32 to index
    %c0_16 = arith.constant 0 : index
    %22 = vector.load %arg12[%21, %c0_16] : memref<64x384xf32, #tpu.memory_space<vmem>>, vector<8x384xf32>
    %cst_17 = arith.constant dense<0.000000e+00> : vector<8x384xf32>
    %23 = tpu.matmul %18, %16, %cst_17 {dimension_numbers = #tpu.dot_dimension_numbers<[1], [0], [0], [1], [0, 0, 1, 1], [], []>} : vector<8x128xf32>, vector<128x384xf32>, vector<8x384xf32> -> vector<8x384xf32>
    %24 = vector.broadcast %17 : vector<1x384xf32> to vector<8x384xf32>
    %25 = arith.addf %23, %24 : vector<8x384xf32>
    %26 = vector.extract_strided_slice %22 {offsets = [0, 0], sizes = [8, 128], strides = [1, 1]} : vector<8x384xf32> to vector<8x128xf32>
    %27 = vector.extract_strided_slice %25 {offsets = [0, 0], sizes = [8, 128], strides = [1, 1]} : vector<8x384xf32> to vector<8x128xf32>
    %28 = arith.addf %26, %27 : vector<8x128xf32>
    %29 = arith.negf %28 : vector<8x128xf32>
    %30 = math.exp %29 : vector<8x128xf32>
    %cst_18 = arith.constant 1.000000e+00 : f32
    %31 = vector.broadcast %cst_18 : f32 to vector<8x128xf32>
    %32 = arith.addf %31, %30 : vector<8x128xf32>
    %33 = arith.divf %31, %32 : vector<8x128xf32>
    %34 = vector.extract_strided_slice %22 {offsets = [0, 128], sizes = [8, 128], strides = [1, 1]} : vector<8x384xf32> to vector<8x128xf32>
    %35 = vector.extract_strided_slice %25 {offsets = [0, 128], sizes = [8, 128], strides = [1, 1]} : vector<8x384xf32> to vector<8x128xf32>
    %36 = arith.addf %34, %35 : vector<8x128xf32>
    %37 = arith.negf %36 : vector<8x128xf32>
    %38 = math.exp %37 : vector<8x128xf32>
    %cst_19 = arith.constant 1.000000e+00 : f32
    %39 = vector.broadcast %cst_19 : f32 to vector<8x128xf32>
    %40 = arith.addf %39, %38 : vector<8x128xf32>
    %41 = arith.divf %39, %40 : vector<8x128xf32>
    %42 = vector.extract_strided_slice %22 {offsets = [0, 256], sizes = [8, 128], strides = [1, 1]} : vector<8x384xf32> to vector<8x128xf32>
    %43 = vector.extract_strided_slice %25 {offsets = [0, 256], sizes = [8, 128], strides = [1, 1]} : vector<8x384xf32> to vector<8x128xf32>
    %44 = arith.mulf %33, %43 : vector<8x128xf32>
    %45 = arith.addf %42, %44 : vector<8x128xf32>
    %46 = math.tanh %45 : vector<8x128xf32>
    %cst_20 = arith.constant 1.000000e+00 : f32
    %47 = vector.broadcast %cst_20 : f32 to vector<8x128xf32>
    %48 = arith.subf %47, %41 : vector<8x128xf32>
    %49 = arith.mulf %48, %46 : vector<8x128xf32>
    %50 = arith.mulf %41, %18 : vector<8x128xf32>
    %51 = arith.addf %49, %50 : vector<8x128xf32>
    %52 = arith.index_cast %20 : i32 to index
    %c0_21 = arith.constant 0 : index
    %53 = vector.load %arg13[%52, %c0_21] : memref<64x128xf32, #tpu.memory_space<vmem>>, vector<8x128xf32>
    tpu.vector_store %arg13[%52, %c0_21], %51 {strides = array<i32>} : memref<64x128xf32, #tpu.memory_space<vmem>>, vector<8x128xf32>,
    %c1_i32 = arith.constant 1 : i32
    %c8_i32_22 = arith.constant 8 : i32
    %54 = arith.muli %c1_i32, %c8_i32_22 : i32
    %55 = tpu.assume_multiple %54, 8 : i32
    %56 = arith.index_cast %55 : i32 to index
    %c0_23 = arith.constant 0 : index
    %57 = vector.load %arg12[%56, %c0_23] : memref<64x384xf32, #tpu.memory_space<vmem>>, vector<8x384xf32>
    %cst_24 = arith.constant dense<0.000000e+00> : vector<8x384xf32>
    %58 = tpu.matmul %51, %16, %cst_24 {dimension_numbers = #tpu.dot_dimension_numbers<[1], [0], [0], [1], [0, 0, 1, 1], [], []>} : vector<8x128xf32>, vector<128x384xf32>, vector<8x384xf32> -> vector<8x384xf32>
    %59 = vector.broadcast %17 : vector<1x384xf32> to vector<8x384xf32>
    %60 = arith.addf %58, %59 : vector<8x384xf32>
    %61 = vector.extract_strided_slice %57 {offsets = [0, 0], sizes = [8, 128], strides = [1, 1]} : vector<8x384xf32> to vector<8x128xf32>
    %62 = vector.extract_strided_slice %60 {offsets = [0, 0], sizes = [8, 128], strides = [1, 1]} : vector<8x384xf32> to vector<8x128xf32>
    %63 = arith.addf %61, %62 : vector<8x128xf32>
    %64 = arith.negf %63 : vector<8x128xf32>
    %65 = math.exp %64 : vector<8x128xf32>
    %cst_25 = arith.constant 1.000000e+00 : f32
    %66 = vector.broadcast %cst_25 : f32 to vector<8x128xf32>
    %67 = arith.addf %66, %65 : vector<8x128xf32>
    %68 = arith.divf %66, %67 : vector<8x128xf32>
    %69 = vector.extract_strided_slice %57 {offsets = [0, 128], sizes = [8, 128], strides = [1, 1]} : vector<8x384xf32> to vector<8x128xf32>
    %70 = vector.extract_strided_slice %60 {offsets = [0, 128], sizes = [8, 128], strides = [1, 1]} : vector<8x384xf32> to vector<8x128xf32>
    %71 = arith.addf %69, %70 : vector<8x128xf32>
    %72 = arith.negf %71 : vector<8x128xf32>
    %73 = math.exp %72 : vector<8x128xf32>
    %cst_26 = arith.constant 1.000000e+00 : f32
    %74 = vector.broadcast %cst_26 : f32 to vector<8x128xf32>
    %75 = arith.addf %74, %73 : vector<8x128xf32>
    %76 = arith.divf %74, %75 : vector<8x128xf32>
    %77 = vector.extract_strided_slice %57 {offsets = [0, 256], sizes = [8, 128], strides = [1, 1]} : vector<8x384xf32> to vector<8x128xf32>
    %78 = vector.extract_strided_slice %60 {offsets = [0, 256], sizes = [8, 128], strides = [1, 1]} : vector<8x384xf32> to vector<8x128xf32>
    %79 = arith.mulf %68, %78 : vector<8x128xf32>
    %80 = arith.addf %77, %79 : vector<8x128xf32>
    %81 = math.tanh %80 : vector<8x128xf32>
    %cst_27 = arith.constant 1.000000e+00 : f32
    %82 = vector.broadcast %cst_27 : f32 to vector<8x128xf32>
    %83 = arith.subf %82, %76 : vector<8x128xf32>
    %84 = arith.mulf %83, %81 : vector<8x128xf32>
    %85 = arith.mulf %76, %51 : vector<8x128xf32>
    %86 = arith.addf %84, %85 : vector<8x128xf32>
    %87 = arith.index_cast %55 : i32 to index
    %c0_28 = arith.constant 0 : index
    %88 = vector.load %arg13[%87, %c0_28] : memref<64x128xf32, #tpu.memory_space<vmem>>, vector<8x128xf32>
    tpu.vector_store %arg13[%87, %c0_28], %86 {strides = array<i32>} : memref<64x128xf32, #tpu.memory_space<vmem>>, vector<8x128xf32>,
    %c2_i32 = arith.constant 2 : i32
    %c8_i32_29 = arith.constant 8 : i32
    %89 = arith.muli %c2_i32, %c8_i32_29 : i32
    %90 = tpu.assume_multiple %89, 8 : i32
    %91 = arith.index_cast %90 : i32 to index
    %c0_30 = arith.constant 0 : index
    %92 = vector.load %arg12[%91, %c0_30] : memref<64x384xf32, #tpu.memory_space<vmem>>, vector<8x384xf32>
    %cst_31 = arith.constant dense<0.000000e+00> : vector<8x384xf32>
    %93 = tpu.matmul %86, %16, %cst_31 {dimension_numbers = #tpu.dot_dimension_numbers<[1], [0], [0], [1], [0, 0, 1, 1], [], []>} : vector<8x128xf32>, vector<128x384xf32>, vector<8x384xf32> -> vector<8x384xf32>
    %94 = vector.broadcast %17 : vector<1x384xf32> to vector<8x384xf32>
    %95 = arith.addf %93, %94 : vector<8x384xf32>
    %96 = vector.extract_strided_slice %92 {offsets = [0, 0], sizes = [8, 128], strides = [1, 1]} : vector<8x384xf32> to vector<8x128xf32>
    %97 = vector.extract_strided_slice %95 {offsets = [0, 0], sizes = [8, 128], strides = [1, 1]} : vector<8x384xf32> to vector<8x128xf32>
    %98 = arith.addf %96, %97 : vector<8x128xf32>
    %99 = arith.negf %98 : vector<8x128xf32>
    %100 = math.exp %99 : vector<8x128xf32>
    %cst_32 = arith.constant 1.000000e+00 : f32
    %101 = vector.broadcast %cst_32 : f32 to vector<8x128xf32>
    %102 = arith.addf %101, %100 : vector<8x128xf32>
    %103 = arith.divf %101, %102 : vector<8x128xf32>
    %104 = vector.extract_strided_slice %92 {offsets = [0, 128], sizes = [8, 128], strides = [1, 1]} : vector<8x384xf32> to vector<8x128xf32>
    %105 = vector.extract_strided_slice %95 {offsets = [0, 128], sizes = [8, 128], strides = [1, 1]} : vector<8x384xf32> to vector<8x128xf32>
    %106 = arith.addf %104, %105 : vector<8x128xf32>
    %107 = arith.negf %106 : vector<8x128xf32>
    %108 = math.exp %107 : vector<8x128xf32>
    %cst_33 = arith.constant 1.000000e+00 : f32
    %109 = vector.broadcast %cst_33 : f32 to vector<8x128xf32>
    %110 = arith.addf %109, %108 : vector<8x128xf32>
    %111 = arith.divf %109, %110 : vector<8x128xf32>
    %112 = vector.extract_strided_slice %92 {offsets = [0, 256], sizes = [8, 128], strides = [1, 1]} : vector<8x384xf32> to vector<8x128xf32>
    %113 = vector.extract_strided_slice %95 {offsets = [0, 256], sizes = [8, 128], strides = [1, 1]} : vector<8x384xf32> to vector<8x128xf32>
    %114 = arith.mulf %103, %113 : vector<8x128xf32>
    %115 = arith.addf %112, %114 : vector<8x128xf32>
    %116 = math.tanh %115 : vector<8x128xf32>
    %cst_34 = arith.constant 1.000000e+00 : f32
    %117 = vector.broadcast %cst_34 : f32 to vector<8x128xf32>
    %118 = arith.subf %117, %111 : vector<8x128xf32>
    %119 = arith.mulf %118, %116 : vector<8x128xf32>
    %120 = arith.mulf %111, %86 : vector<8x128xf32>
    %121 = arith.addf %119, %120 : vector<8x128xf32>
    %122 = arith.index_cast %90 : i32 to index
    %c0_35 = arith.constant 0 : index
    %123 = vector.load %arg13[%122, %c0_35] : memref<64x128xf32, #tpu.memory_space<vmem>>, vector<8x128xf32>
    tpu.vector_store %arg13[%122, %c0_35], %121 {strides = array<i32>} : memref<64x128xf32, #tpu.memory_space<vmem>>, vector<8x128xf32>,
    %c3_i32 = arith.constant 3 : i32
    %c8_i32_36 = arith.constant 8 : i32
    %124 = arith.muli %c3_i32, %c8_i32_36 : i32
    %125 = tpu.assume_multiple %124, 8 : i32
    %126 = arith.index_cast %125 : i32 to index
    %c0_37 = arith.constant 0 : index
    %127 = vector.load %arg12[%126, %c0_37] : memref<64x384xf32, #tpu.memory_space<vmem>>, vector<8x384xf32>
    %cst_38 = arith.constant dense<0.000000e+00> : vector<8x384xf32>
    %128 = tpu.matmul %121, %16, %cst_38 {dimension_numbers = #tpu.dot_dimension_numbers<[1], [0], [0], [1], [0, 0, 1, 1], [], []>} : vector<8x128xf32>, vector<128x384xf32>, vector<8x384xf32> -> vector<8x384xf32>
    %129 = vector.broadcast %17 : vector<1x384xf32> to vector<8x384xf32>
    %130 = arith.addf %128, %129 : vector<8x384xf32>
    %131 = vector.extract_strided_slice %127 {offsets = [0, 0], sizes = [8, 128], strides = [1, 1]} : vector<8x384xf32> to vector<8x128xf32>
    %132 = vector.extract_strided_slice %130 {offsets = [0, 0], sizes = [8, 128], strides = [1, 1]} : vector<8x384xf32> to vector<8x128xf32>
    %133 = arith.addf %131, %132 : vector<8x128xf32>
    %134 = arith.negf %133 : vector<8x128xf32>
    %135 = math.exp %134 : vector<8x128xf32>
    %cst_39 = arith.constant 1.000000e+00 : f32
    %136 = vector.broadcast %cst_39 : f32 to vector<8x128xf32>
    %137 = arith.addf %136, %135 : vector<8x128xf32>
    %138 = arith.divf %136, %137 : vector<8x128xf32>
    %139 = vector.extract_strided_slice %127 {offsets = [0, 128], sizes = [8, 128], strides = [1, 1]} : vector<8x384xf32> to vector<8x128xf32>
    %140 = vector.extract_strided_slice %130 {offsets = [0, 128], sizes = [8, 128], strides = [1, 1]} : vector<8x384xf32> to vector<8x128xf32>
    %141 = arith.addf %139, %140 : vector<8x128xf32>
    %142 = arith.negf %141 : vector<8x128xf32>
    %143 = math.exp %142 : vector<8x128xf32>
    %cst_40 = arith.constant 1.000000e+00 : f32
    %144 = vector.broadcast %cst_40 : f32 to vector<8x128xf32>
    %145 = arith.addf %144, %143 : vector<8x128xf32>
    %146 = arith.divf %144, %145 : vector<8x128xf32>
    %147 = vector.extract_strided_slice %127 {offsets = [0, 256], sizes = [8, 128], strides = [1, 1]} : vector<8x384xf32> to vector<8x128xf32>
    %148 = vector.extract_strided_slice %130 {offsets = [0, 256], sizes = [8, 128], strides = [1, 1]} : vector<8x384xf32> to vector<8x128xf32>
    %149 = arith.mulf %138, %148 : vector<8x128xf32>
    %150 = arith.addf %147, %149 : vector<8x128xf32>
    %151 = math.tanh %150 : vector<8x128xf32>
    %cst_41 = arith.constant 1.000000e+00 : f32
    %152 = vector.broadcast %cst_41 : f32 to vector<8x128xf32>
    %153 = arith.subf %152, %146 : vector<8x128xf32>
    %154 = arith.mulf %153, %151 : vector<8x128xf32>
    %155 = arith.mulf %146, %121 : vector<8x128xf32>
    %156 = arith.addf %154, %155 : vector<8x128xf32>
    %157 = arith.index_cast %125 : i32 to index
    %c0_42 = arith.constant 0 : index
    %158 = vector.load %arg13[%157, %c0_42] : memref<64x128xf32, #tpu.memory_space<vmem>>, vector<8x128xf32>
    tpu.vector_store %arg13[%157, %c0_42], %156 {strides = array<i32>} : memref<64x128xf32, #tpu.memory_space<vmem>>, vector<8x128xf32>,
    %c4_i32 = arith.constant 4 : i32
    %c8_i32_43 = arith.constant 8 : i32
    %159 = arith.muli %c4_i32, %c8_i32_43 : i32
    %160 = tpu.assume_multiple %159, 8 : i32
    %161 = arith.index_cast %160 : i32 to index
    %c0_44 = arith.constant 0 : index
    %162 = vector.load %arg12[%161, %c0_44] : memref<64x384xf32, #tpu.memory_space<vmem>>, vector<8x384xf32>
    %cst_45 = arith.constant dense<0.000000e+00> : vector<8x384xf32>
    %163 = tpu.matmul %156, %16, %cst_45 {dimension_numbers = #tpu.dot_dimension_numbers<[1], [0], [0], [1], [0, 0, 1, 1], [], []>} : vector<8x128xf32>, vector<128x384xf32>, vector<8x384xf32> -> vector<8x384xf32>
    %164 = vector.broadcast %17 : vector<1x384xf32> to vector<8x384xf32>
    %165 = arith.addf %163, %164 : vector<8x384xf32>
    %166 = vector.extract_strided_slice %162 {offsets = [0, 0], sizes = [8, 128], strides = [1, 1]} : vector<8x384xf32> to vector<8x128xf32>
    %167 = vector.extract_strided_slice %165 {offsets = [0, 0], sizes = [8, 128], strides = [1, 1]} : vector<8x384xf32> to vector<8x128xf32>
    %168 = arith.addf %166, %167 : vector<8x128xf32>
    %169 = arith.negf %168 : vector<8x128xf32>
    %170 = math.exp %169 : vector<8x128xf32>
    %cst_46 = arith.constant 1.000000e+00 : f32
    %171 = vector.broadcast %cst_46 : f32 to vector<8x128xf32>
    %172 = arith.addf %171, %170 : vector<8x128xf32>
    %173 = arith.divf %171, %172 : vector<8x128xf32>
    %174 = vector.extract_strided_slice %162 {offsets = [0, 128], sizes = [8, 128], strides = [1, 1]} : vector<8x384xf32> to vector<8x128xf32>
    %175 = vector.extract_strided_slice %165 {offsets = [0, 128], sizes = [8, 128], strides = [1, 1]} : vector<8x384xf32> to vector<8x128xf32>
    %176 = arith.addf %174, %175 : vector<8x128xf32>
    %177 = arith.negf %176 : vector<8x128xf32>
    %178 = math.exp %177 : vector<8x128xf32>
    %cst_47 = arith.constant 1.000000e+00 : f32
    %179 = vector.broadcast %cst_47 : f32 to vector<8x128xf32>
    %180 = arith.addf %179, %178 : vector<8x128xf32>
    %181 = arith.divf %179, %180 : vector<8x128xf32>
    %182 = vector.extract_strided_slice %162 {offsets = [0, 256], sizes = [8, 128], strides = [1, 1]} : vector<8x384xf32> to vector<8x128xf32>
    %183 = vector.extract_strided_slice %165 {offsets = [0, 256], sizes = [8, 128], strides = [1, 1]} : vector<8x384xf32> to vector<8x128xf32>
    %184 = arith.mulf %173, %183 : vector<8x128xf32>
    %185 = arith.addf %182, %184 : vector<8x128xf32>
    %186 = math.tanh %185 : vector<8x128xf32>
    %cst_48 = arith.constant 1.000000e+00 : f32
    %187 = vector.broadcast %cst_48 : f32 to vector<8x128xf32>
    %188 = arith.subf %187, %181 : vector<8x128xf32>
    %189 = arith.mulf %188, %186 : vector<8x128xf32>
    %190 = arith.mulf %181, %156 : vector<8x128xf32>
    %191 = arith.addf %189, %190 : vector<8x128xf32>
    %192 = arith.index_cast %160 : i32 to index
    %c0_49 = arith.constant 0 : index
    %193 = vector.load %arg13[%192, %c0_49] : memref<64x128xf32, #tpu.memory_space<vmem>>, vector<8x128xf32>
    tpu.vector_store %arg13[%192, %c0_49], %191 {strides = array<i32>} : memref<64x128xf32, #tpu.memory_space<vmem>>, vector<8x128xf32>,
    %c5_i32 = arith.constant 5 : i32
    %c8_i32_50 = arith.constant 8 : i32
    %194 = arith.muli %c5_i32, %c8_i32_50 : i32
    %195 = tpu.assume_multiple %194, 8 : i32
    %196 = arith.index_cast %195 : i32 to index
    %c0_51 = arith.constant 0 : index
    %197 = vector.load %arg12[%196, %c0_51] : memref<64x384xf32, #tpu.memory_space<vmem>>, vector<8x384xf32>
    %cst_52 = arith.constant dense<0.000000e+00> : vector<8x384xf32>
    %198 = tpu.matmul %191, %16, %cst_52 {dimension_numbers = #tpu.dot_dimension_numbers<[1], [0], [0], [1], [0, 0, 1, 1], [], []>} : vector<8x128xf32>, vector<128x384xf32>, vector<8x384xf32> -> vector<8x384xf32>
    %199 = vector.broadcast %17 : vector<1x384xf32> to vector<8x384xf32>
    %200 = arith.addf %198, %199 : vector<8x384xf32>
    %201 = vector.extract_strided_slice %197 {offsets = [0, 0], sizes = [8, 128], strides = [1, 1]} : vector<8x384xf32> to vector<8x128xf32>
    %202 = vector.extract_strided_slice %200 {offsets = [0, 0], sizes = [8, 128], strides = [1, 1]} : vector<8x384xf32> to vector<8x128xf32>
    %203 = arith.addf %201, %202 : vector<8x128xf32>
    %204 = arith.negf %203 : vector<8x128xf32>
    %205 = math.exp %204 : vector<8x128xf32>
    %cst_53 = arith.constant 1.000000e+00 : f32
    %206 = vector.broadcast %cst_53 : f32 to vector<8x128xf32>
    %207 = arith.addf %206, %205 : vector<8x128xf32>
    %208 = arith.divf %206, %207 : vector<8x128xf32>
    %209 = vector.extract_strided_slice %197 {offsets = [0, 128], sizes = [8, 128], strides = [1, 1]} : vector<8x384xf32> to vector<8x128xf32>
    %210 = vector.extract_strided_slice %200 {offsets = [0, 128], sizes = [8, 128], strides = [1, 1]} : vector<8x384xf32> to vector<8x128xf32>
    %211 = arith.addf %209, %210 : vector<8x128xf32>
    %212 = arith.negf %211 : vector<8x128xf32>
    %213 = math.exp %212 : vector<8x128xf32>
    %cst_54 = arith.constant 1.000000e+00 : f32
    %214 = vector.broadcast %cst_54 : f32 to vector<8x128xf32>
    %215 = arith.addf %214, %213 : vector<8x128xf32>
    %216 = arith.divf %214, %215 : vector<8x128xf32>
    %217 = vector.extract_strided_slice %197 {offsets = [0, 256], sizes = [8, 128], strides = [1, 1]} : vector<8x384xf32> to vector<8x128xf32>
    %218 = vector.extract_strided_slice %200 {offsets = [0, 256], sizes = [8, 128], strides = [1, 1]} : vector<8x384xf32> to vector<8x128xf32>
    %219 = arith.mulf %208, %218 : vector<8x128xf32>
    %220 = arith.addf %217, %219 : vector<8x128xf32>
    %221 = math.tanh %220 : vector<8x128xf32>
    %cst_55 = arith.constant 1.000000e+00 : f32
    %222 = vector.broadcast %cst_55 : f32 to vector<8x128xf32>
    %223 = arith.subf %222, %216 : vector<8x128xf32>
    %224 = arith.mulf %223, %221 : vector<8x128xf32>
    %225 = arith.mulf %216, %191 : vector<8x128xf32>
    %226 = arith.addf %224, %225 : vector<8x128xf32>
    %227 = arith.index_cast %195 : i32 to index
    %c0_56 = arith.constant 0 : index
    %228 = vector.load %arg13[%227, %c0_56] : memref<64x128xf32, #tpu.memory_space<vmem>>, vector<8x128xf32>
    tpu.vector_store %arg13[%227, %c0_56], %226 {strides = array<i32>} : memref<64x128xf32, #tpu.memory_space<vmem>>, vector<8x128xf32>,
    %c6_i32 = arith.constant 6 : i32
    %c8_i32_57 = arith.constant 8 : i32
    %229 = arith.muli %c6_i32, %c8_i32_57 : i32
    %230 = tpu.assume_multiple %229, 8 : i32
    %231 = arith.index_cast %230 : i32 to index
    %c0_58 = arith.constant 0 : index
    %232 = vector.load %arg12[%231, %c0_58] : memref<64x384xf32, #tpu.memory_space<vmem>>, vector<8x384xf32>
    %cst_59 = arith.constant dense<0.000000e+00> : vector<8x384xf32>
    %233 = tpu.matmul %226, %16, %cst_59 {dimension_numbers = #tpu.dot_dimension_numbers<[1], [0], [0], [1], [0, 0, 1, 1], [], []>} : vector<8x128xf32>, vector<128x384xf32>, vector<8x384xf32> -> vector<8x384xf32>
    %234 = vector.broadcast %17 : vector<1x384xf32> to vector<8x384xf32>
    %235 = arith.addf %233, %234 : vector<8x384xf32>
    %236 = vector.extract_strided_slice %232 {offsets = [0, 0], sizes = [8, 128], strides = [1, 1]} : vector<8x384xf32> to vector<8x128xf32>
    %237 = vector.extract_strided_slice %235 {offsets = [0, 0], sizes = [8, 128], strides = [1, 1]} : vector<8x384xf32> to vector<8x128xf32>
    %238 = arith.addf %236, %237 : vector<8x128xf32>
    %239 = arith.negf %238 : vector<8x128xf32>
    %240 = math.exp %239 : vector<8x128xf32>
    %cst_60 = arith.constant 1.000000e+00 : f32
    %241 = vector.broadcast %cst_60 : f32 to vector<8x128xf32>
    %242 = arith.addf %241, %240 : vector<8x128xf32>
    %243 = arith.divf %241, %242 : vector<8x128xf32>
    %244 = vector.extract_strided_slice %232 {offsets = [0, 128], sizes = [8, 128], strides = [1, 1]} : vector<8x384xf32> to vector<8x128xf32>
    %245 = vector.extract_strided_slice %235 {offsets = [0, 128], sizes = [8, 128], strides = [1, 1]} : vector<8x384xf32> to vector<8x128xf32>
    %246 = arith.addf %244, %245 : vector<8x128xf32>
    %247 = arith.negf %246 : vector<8x128xf32>
    %248 = math.exp %247 : vector<8x128xf32>
    %cst_61 = arith.constant 1.000000e+00 : f32
    %249 = vector.broadcast %cst_61 : f32 to vector<8x128xf32>
    %250 = arith.addf %249, %248 : vector<8x128xf32>
    %251 = arith.divf %249, %250 : vector<8x128xf32>
    %252 = vector.extract_strided_slice %232 {offsets = [0, 256], sizes = [8, 128], strides = [1, 1]} : vector<8x384xf32> to vector<8x128xf32>
    %253 = vector.extract_strided_slice %235 {offsets = [0, 256], sizes = [8, 128], strides = [1, 1]} : vector<8x384xf32> to vector<8x128xf32>
    %254 = arith.mulf %243, %253 : vector<8x128xf32>
    %255 = arith.addf %252, %254 : vector<8x128xf32>
    %256 = math.tanh %255 : vector<8x128xf32>
    %cst_62 = arith.constant 1.000000e+00 : f32
    %257 = vector.broadcast %cst_62 : f32 to vector<8x128xf32>
    %258 = arith.subf %257, %251 : vector<8x128xf32>
    %259 = arith.mulf %258, %256 : vector<8x128xf32>
    %260 = arith.mulf %251, %226 : vector<8x128xf32>
    %261 = arith.addf %259, %260 : vector<8x128xf32>
    %262 = arith.index_cast %230 : i32 to index
    %c0_63 = arith.constant 0 : index
    %263 = vector.load %arg13[%262, %c0_63] : memref<64x128xf32, #tpu.memory_space<vmem>>, vector<8x128xf32>
    tpu.vector_store %arg13[%262, %c0_63], %261 {strides = array<i32>} : memref<64x128xf32, #tpu.memory_space<vmem>>, vector<8x128xf32>,
    %c7_i32 = arith.constant 7 : i32
    %c8_i32_64 = arith.constant 8 : i32
    %264 = arith.muli %c7_i32, %c8_i32_64 : i32
    %265 = tpu.assume_multiple %264, 8 : i32
    %266 = arith.index_cast %265 : i32 to index
    %c0_65 = arith.constant 0 : index
    %267 = vector.load %arg12[%266, %c0_65] : memref<64x384xf32, #tpu.memory_space<vmem>>, vector<8x384xf32>
    %cst_66 = arith.constant dense<0.000000e+00> : vector<8x384xf32>
    %268 = tpu.matmul %261, %16, %cst_66 {dimension_numbers = #tpu.dot_dimension_numbers<[1], [0], [0], [1], [0, 0, 1, 1], [], []>} : vector<8x128xf32>, vector<128x384xf32>, vector<8x384xf32> -> vector<8x384xf32>
    %269 = vector.broadcast %17 : vector<1x384xf32> to vector<8x384xf32>
    %270 = arith.addf %268, %269 : vector<8x384xf32>
    %271 = vector.extract_strided_slice %267 {offsets = [0, 0], sizes = [8, 128], strides = [1, 1]} : vector<8x384xf32> to vector<8x128xf32>
    %272 = vector.extract_strided_slice %270 {offsets = [0, 0], sizes = [8, 128], strides = [1, 1]} : vector<8x384xf32> to vector<8x128xf32>
    %273 = arith.addf %271, %272 : vector<8x128xf32>
    %274 = arith.negf %273 : vector<8x128xf32>
    %275 = math.exp %274 : vector<8x128xf32>
    %cst_67 = arith.constant 1.000000e+00 : f32
    %276 = vector.broadcast %cst_67 : f32 to vector<8x128xf32>
    %277 = arith.addf %276, %275 : vector<8x128xf32>
    %278 = arith.divf %276, %277 : vector<8x128xf32>
    %279 = vector.extract_strided_slice %267 {offsets = [0, 128], sizes = [8, 128], strides = [1, 1]} : vector<8x384xf32> to vector<8x128xf32>
    %280 = vector.extract_strided_slice %270 {offsets = [0, 128], sizes = [8, 128], strides = [1, 1]} : vector<8x384xf32> to vector<8x128xf32>
    %281 = arith.addf %279, %280 : vector<8x128xf32>
    %282 = arith.negf %281 : vector<8x128xf32>
    %283 = math.exp %282 : vector<8x128xf32>
    %cst_68 = arith.constant 1.000000e+00 : f32
    %284 = vector.broadcast %cst_68 : f32 to vector<8x128xf32>
    %285 = arith.addf %284, %283 : vector<8x128xf32>
    %286 = arith.divf %284, %285 : vector<8x128xf32>
    %287 = vector.extract_strided_slice %267 {offsets = [0, 256], sizes = [8, 128], strides = [1, 1]} : vector<8x384xf32> to vector<8x128xf32>
    %288 = vector.extract_strided_slice %270 {offsets = [0, 256], sizes = [8, 128], strides = [1, 1]} : vector<8x384xf32> to vector<8x128xf32>
    %289 = arith.mulf %278, %288 : vector<8x128xf32>
    %290 = arith.addf %287, %289 : vector<8x128xf32>
    %291 = math.tanh %290 : vector<8x128xf32>
    %cst_69 = arith.constant 1.000000e+00 : f32
    %292 = vector.broadcast %cst_69 : f32 to vector<8x128xf32>
    %293 = arith.subf %292, %286 : vector<8x128xf32>
    %294 = arith.mulf %293, %291 : vector<8x128xf32>
    %295 = arith.mulf %286, %261 : vector<8x128xf32>
    %296 = arith.addf %294, %295 : vector<8x128xf32>
    %297 = arith.index_cast %265 : i32 to index
    %c0_70 = arith.constant 0 : index
    %298 = vector.load %arg13[%297, %c0_70] : memref<64x128xf32, #tpu.memory_space<vmem>>, vector<8x128xf32>
    tpu.vector_store %arg13[%297, %c0_70], %296 {strides = array<i32>} : memref<64x128xf32, #tpu.memory_space<vmem>>, vector<8x128xf32>,
    %c8_i32_71 = arith.constant 8 : i32
    %c0_72 = arith.constant 0 : index
    %c0_73 = arith.constant 0 : index
    %299 = vector.load %arg11[%c0_72, %c0_73] : memref<8x128xf32, #tpu.memory_space<vmem>>, vector<8x128xf32>
    tpu.vector_store %arg11[%c0_72, %c0_73], %296 {strides = array<i32>} : memref<8x128xf32, #tpu.memory_space<vmem>>, vector<8x128xf32>,
    %c0_74 = arith.constant 0 : index
    %c0_75 = arith.constant 0 : index
    %300 = vector.load %arg10[%c0_74, %c0_75] : memref<8x128xf32, #tpu.memory_space<vmem>>, vector<8x128xf32>
    tpu.vector_store %arg10[%c0_74, %c0_75], %296 {strides = array<i32>} : memref<8x128xf32, #tpu.memory_space<vmem>>, vector<8x128xf32>,
    %c0_76 = arith.constant 0 : index
    %c0_77 = arith.constant 0 : index
    %301 = vector.load %arg13[%c0_76, %c0_77] : memref<64x128xf32, #tpu.memory_space<vmem>>, vector<64x128xf32>
    %c0_78 = arith.constant 0 : index
    %c0_79 = arith.constant 0 : index
    %302 = vector.load %arg7[%c0_78, %c0_79] : memref<128x128xf32, #tpu.memory_space<vmem>>, vector<128x128xf32>
    %cst_80 = arith.constant dense<0.000000e+00> : vector<64x128xf32>
    %303 = tpu.matmul %301, %302, %cst_80 {dimension_numbers = #tpu.dot_dimension_numbers<[1], [0], [0], [1], [0, 0, 1, 1], [], []>} : vector<64x128xf32>, vector<128x128xf32>, vector<64x128xf32> -> vector<64x128xf32>
    %c0_81 = arith.constant 0 : index
    %c0_82 = arith.constant 0 : index
    %304 = vector.load %arg8[%c0_81, %c0_82] : memref<1x128xf32, #tpu.memory_space<vmem>>, vector<1x128xf32>
    %305 = vector.broadcast %304 : vector<1x128xf32> to vector<64x128xf32>
    %306 = arith.addf %303, %305 : vector<64x128xf32>
    %c0_83 = arith.constant 0 : index
    %c0_84 = arith.constant 0 : index
    %c0_85 = arith.constant 0 : index
    %307 = vector.load %arg9[%c0_83, %c0_84, %c0_85] : memref<1x64x128xf32, #tpu.memory_space<vmem>>, vector<1x64x128xf32>
    %308 = vector.shape_cast %307 : vector<1x64x128xf32> to vector<64x128xf32>
    %309 = vector.shape_cast %306 : vector<64x128xf32> to vector<1x64x128xf32>
    tpu.vector_store %arg9[%c0_83, %c0_84, %c0_85], %309 {strides = array<i32>} : memref<1x64x128xf32, #tpu.memory_space<vmem>>, vector<1x64x128xf32>,
    return
  }
  func.func @transform_0(%arg0: i32) -> (i32, i32, i32) {
    %c0_i32 = arith.constant 0 : i32
    %c0_i32_0 = arith.constant 0 : i32
    %c0_i32_1 = arith.constant 0 : i32
    return %arg0, %c0_i32, %c0_i32_0 : i32, i32, i32
  }
  func.func @transform_1(%arg0: i32) -> (i32, i32) {
    %c0_i32 = arith.constant 0 : i32
    %c0_i32_0 = arith.constant 0 : i32
    %c0_i32_1 = arith.constant 0 : i32
    return %c0_i32, %c0_i32_0 : i32, i32
  }
  func.func @transform_2(%arg0: i32) -> (i32, i32) {
    %c0_i32 = arith.constant 0 : i32
    %c0_i32_0 = arith.constant 0 : i32
    %c0_i32_1 = arith.constant 0 : i32
    return %c0_i32, %c0_i32_0 : i32, i32
  }
  func.func @transform_3(%arg0: i32) -> (i32, i32) {
    %c0_i32 = arith.constant 0 : i32
    %c0_i32_0 = arith.constant 0 : i32
    %c0_i32_1 = arith.constant 0 : i32
    return %c0_i32, %c0_i32_0 : i32, i32
  }
  func.func @transform_4(%arg0: i32) -> (i32, i32) {
    %c0_i32 = arith.constant 0 : i32
    %c0_i32_0 = arith.constant 0 : i32
    %c0_i32_1 = arith.constant 0 : i32
    return %c0_i32, %c0_i32_0 : i32, i32
  }
  func.func @transform_5(%arg0: i32) -> (i32, i32) {
    %c0_i32 = arith.constant 0 : i32
    %c0_i32_0 = arith.constant 0 : i32
    %c0_i32_1 = arith.constant 0 : i32
    return %c0_i32, %c0_i32_0 : i32, i32
  }
  func.func @transform_6(%arg0: i32) -> (i32, i32) {
    %c0_i32 = arith.constant 0 : i32
    %c0_i32_0 = arith.constant 0 : i32
    %c0_i32_1 = arith.constant 0 : i32
    return %c0_i32, %c0_i32_0 : i32, i32
  }
  func.func @transform_7(%arg0: i32) -> (i32, i32) {
    %c0_i32 = arith.constant 0 : i32
    %c0_i32_0 = arith.constant 0 : i32
    %c0_i32_1 = arith.constant 0 : i32
    return %c0_i32, %c0_i32_0 : i32, i32
  }
  func.func @transform_8(%arg0: i32) -> (i32, i32, i32) {
    %c0_i32 = arith.constant 0 : i32
    %c0_i32_0 = arith.constant 0 : i32
    %c0_i32_1 = arith.constant 0 : i32
    return %arg0, %c0_i32, %c0_i32_0 : i32, i32, i32
  }
  func.func @transform_9(%arg0: i32) -> (i32, i32) {
    %c0_i32 = arith.constant 0 : i32
    %c0_i32_0 = arith.constant 0 : i32
    %c0_i32_1 = arith.constant 0 : i32
    return %c0_i32, %c0_i32_0 : i32, i32
  }
}

</mosaic_0001>

<llo_original>
// kernel: tpu_custom_call.1
$region0: #{tpu_custom_call.1}
  #allocation0 [shape = 'u32[]', space=smem, size = 0x4, offset = 0x4, fixed_abs, tag = 'smem constant byte address 0x4 - core index']
  #allocation1 [shape = 'u32[72,128]{1,0:T(1,128)}', space=vmem, size = 0x9000, scoped, tag = 'internal scratch']
  #allocation2 [shape = 'f32[8,128]{1,0:T(8,128)}', space=vmem, size = 0x1000, scoped, tag = 'scratch operand']
  #allocation3 [shape = 'f32[64,384]{1,0:T(8,128)}', space=vmem, size = 0x18000, scoped, tag = 'scratch operand']
  #allocation4 [shape = 'f32[64,128]{1,0:T(8,128)}', space=vmem, size = 0x8000, scoped, tag = 'scratch operand']
  %s0 = inlined_call_operand.vmem [shape: s32[1,64,1], index: 0, kind: input, shape index: {}]
  %s1 = inlined_call_operand.vmem [shape: f32[8,128], index: 1, kind: input, shape index: {}]
  %s2 = inlined_call_operand.hbm [shape: f32[128,384], index: 2, kind: input, shape index: {}]
  %s3 = inlined_call_operand.vmem [shape: f32[1,384], index: 3, kind: input, shape index: {}]
  %s4 = inlined_call_operand.hbm [shape: f32[128,384], index: 4, kind: input, shape index: {}]
  %s5 = inlined_call_operand.vmem [shape: f32[1,384], index: 5, kind: input, shape index: {}]
  %s6 = inlined_call_operand.hbm [shape: f32[128,128], index: 6, kind: input, shape index: {}]
  %s7 = inlined_call_operand.vmem [shape: f32[1,128], index: 7, kind: input, shape index: {}]
  %s8 = inlined_call_operand.hbm [shape: f32[1,64,128], index: 8, kind: output, shape index: {0}]
  %s9 = inlined_call_operand.hbm [shape: f32[8,128], index: 9, kind: output, shape index: {1}]
  %10 = xla_tuple %s8, %s9
  %s11 = sld [smem:[#allocation0]]
  $region66: #{tpu_custom_call.1} parent=0
    _
  %s13 = ssub.s32 1, %s11
  %s14 = scalar_select 0, %s13, %s11
  $region1: #{tpu_custom_call.1} parent=0
    #allocation5 [shape = 'u8[196608]{0}', space=vmem, size = 0x30000, scoped, tag = 'input window, operand 2, single buffered']
    #allocation6 [shape = 's32[1]{0}', space=sflag, size = 0x4, scoped, tag = 'scoped memory for tpu_custom_call.1']
    #allocation7 [shape = 's32[1]{0}', space=sflag, size = 0x4, scoped, tag = 'scoped memory for tpu_custom_call.1']
    #allocation8 [shape = 'u8[196608]{0}', space=vmem, size = 0x30000, scoped, tag = 'input window, operand 4, single buffered']
    #allocation9 [shape = 's32[1]{0}', space=sflag, size = 0x4, scoped, tag = 'scoped memory for tpu_custom_call.1']
    #allocation10 [shape = 'u8[65536]{0}', space=vmem, size = 0x10000, scoped, tag = 'input window, operand 6, single buffered']
    #allocation11 [shape = 'u8[32768]{0}', space=vmem, size = 0x8000, scoped, tag = 'output window, operand 0, single buffered']
    #allocation12 [shape = 'u8[4096]{0}', space=vmem, size = 0x1000, scoped, tag = 'output window, operand 1, single buffered']
    #allocation13 [shape = 's32[1]{0}', space=sflag, size = 0x4, scoped, tag = 'scoped memory for tpu_custom_call.1']
    %15 = vsyncpa [#allocation6], 0
    %16 = vsyncpa [#allocation9], 0
    %17 = vsyncpa [#allocation7], 0
    %18 = vsyncpa [#allocation13], 0
    // Predicated region
    $region2: #{tpu_custom_call.1} parent=1 // pred_check
      _
    $region3: #{tpu_custom_call.1} parent=1 // pred_check_branch
      %20 = sbr.rel (0) target = $region5
    $region4: #{tpu_custom_call.1} parent=1 // pred_region
      _
    $region5: #{tpu_custom_call.1} parent=1 // pred_fallthru
      _
    // Predicated region
    $region6: #{tpu_custom_call.1} parent=1 // pred_check
      _
    $region7: #{tpu_custom_call.1} parent=1 // pred_check_branch
      %22 = sbr.rel (0) target = $region9
    $region8: #{tpu_custom_call.1} parent=1 // pred_region
      _
    $region9: #{tpu_custom_call.1} parent=1 // pred_fallthru
      _
    // Predicated region
    $region10: #{tpu_custom_call.1} parent=1 // pred_check
      _
    $region11: #{tpu_custom_call.1} parent=1 // pred_check_branch
      %24 = sbr.rel (0) target = $region13
    $region12: #{tpu_custom_call.1} parent=1 // pred_region
      %26 = vsyncadd [#allocation6], 0
      %s27 = sshll.u32 %s2, 4
      %s28 = int_to_ptr.hbm [resolvable:$true] %s27
      %s29 = sshll.u32 [#allocation5], 4
      %s30 = int_to_ptr.vmem [resolvable:$true] %s29
      %35 = dma.hbm_to_vmem [thread:$0]  %s28, 6144, %s30, [#allocation6], 384, 384, 24
    $region13: #{tpu_custom_call.1} parent=1 // pred_fallthru
      _
    // Predicated region
    $region14: #{tpu_custom_call.1} parent=1 // pred_check
      _
    $region15: #{tpu_custom_call.1} parent=1 // pred_check_branch
      %37 = sbr.rel (0) target = $region17
    $region16: #{tpu_custom_call.1} parent=1 // pred_region
      _
    $region17: #{tpu_custom_call.1} parent=1 // pred_fallthru
      _
    // Predicated region
    $region18: #{tpu_custom_call.1} parent=1 // pred_check
      _
    $region19: #{tpu_custom_call.1} parent=1 // pred_check_branch
      %39 = sbr.rel (0) target = $region21
    $region20: #{tpu_custom_call.1} parent=1 // pred_region
      %41 = vsyncadd [#allocation9], 0
      %s42 = sshll.u32 %s4, 4
      %s43 = int_to_ptr.hbm [resolvable:$true] %s42
      %s44 = sshll.u32 [#allocation8], 4
      %s45 = int_to_ptr.vmem [resolvable:$true] %s44
      %50 = dma.hbm_to_vmem [thread:$0]  %s43, 6144, %s45, [#allocation9], 384, 384, 24
    $region21: #{tpu_custom_call.1} parent=1 // pred_fallthru
      _
    // Predicated region
    $region22: #{tpu_custom_call.1} parent=1 // pred_check
      _
    $region23: #{tpu_custom_call.1} parent=1 // pred_check_branch
      %52 = sbr.rel (0) target = $region25
    $region24: #{tpu_custom_call.1} parent=1 // pred_region
      _
    $region25: #{tpu_custom_call.1} parent=1 // pred_fallthru
      _
    // Predicated region
    $region26: #{tpu_custom_call.1} parent=1 // pred_check
      _
    $region27: #{tpu_custom_call.1} parent=1 // pred_check_branch
      %54 = sbr.rel (0) target = $region29
    $region28: #{tpu_custom_call.1} parent=1 // pred_region
      %56 = vsyncadd [#allocation9], 0
      %s57 = sshll.u32 %s6, 4
      %s58 = int_to_ptr.hbm [resolvable:$true] %s57
      %s59 = sshll.u32 [#allocation10], 4
      %s60 = int_to_ptr.vmem [resolvable:$true] %s59
      %65 = dma.hbm_to_vmem [thread:$0]  %s58, 2048, %s60, [#allocation9], 128, 128, 8
    $region29: #{tpu_custom_call.1} parent=1 // pred_fallthru
      _
    // Predicated region
    $region30: #{tpu_custom_call.1} parent=1 // pred_check
      _
    $region31: #{tpu_custom_call.1} parent=1 // pred_check_branch
      %67 = sbr.rel (0) target = $region33
    $region32: #{tpu_custom_call.1} parent=1 // pred_region
      _
    $region33: #{tpu_custom_call.1} parent=1 // pred_fallthru
      _
    // Predicated region
    $region34: #{tpu_custom_call.1} parent=1 // pred_check
      _
    $region35: #{tpu_custom_call.1} parent=1 // pred_check_branch
      %69 = sbr.rel (0) target = $region37
    $region36: #{tpu_custom_call.1} parent=1 // pred_region
      %71 = dma.done [#allocation6], 6144
    $region37: #{tpu_custom_call.1} parent=1 // pred_fallthru
      _
    // Predicated region
    $region38: #{tpu_custom_call.1} parent=1 // pred_check
      _
    $region39: #{tpu_custom_call.1} parent=1 // pred_check_branch
      %73 = sbr.rel (0) target = $region41
    $region40: #{tpu_custom_call.1} parent=1 // pred_region
      %75 = dma.done [#allocation9], 6144
    $region41: #{tpu_custom_call.1} parent=1 // pred_fallthru
      _
    // Predicated region
    $region42: #{tpu_custom_call.1} parent=1 // pred_check
      _
    $region43: #{tpu_custom_call.1} parent=1 // pred_check_branch
      %77 = sbr.rel (0) target = $region45
    $region44: #{tpu_custom_call.1} parent=1 // pred_region
      %79 = dma.done [#allocation9], 2048
    $region45: #{tpu_custom_call.1} parent=1 // pred_fallthru
      _
    %p80 = scmp.eq.s32.totalorder 0, 0
    // Predicated region
    $region46: #{tpu_custom_call.1} parent=1 // pred_check
      %p81 = pneg %p80
    $region47: #{tpu_custom_call.1} parent=1 // pred_check_branch
      %83 = sbr.rel (%p81) target = $region49
    $region48: #{tpu_custom_call.1} parent=1 // pred_region
      %v84 = vld [vmem:[%s1] sm:$0xff]
      %85 = vst [vmem:[#allocation2] sm:$0xff] %v84
    $region49: #{tpu_custom_call.1} parent=1 // pred_fallthru
      _
    %v86 = vld [vmem:[%s0] sm:$0xff]
    %v87 = vld [vmem:[%s0 + $0x8] sm:$0xff]
    %v88 = vld [vmem:[%s0 + $0x10] sm:$0xff]
    %v89 = vld [vmem:[%s0 + $0x18] sm:$0xff]
    %v90 = vld [vmem:[%s0 + $0x20] sm:$0xff]
    %v91 = vld [vmem:[%s0 + $0x28] sm:$0xff]
    %v92 = vld [vmem:[%s0 + $0x30] sm:$0xff]
    %v93 = vld [vmem:[%s0 + $0x38] sm:$0xff]
    %v94 = vlaneseq
    %v95 = vand.u32 %v94, 127
    %96 = vset.pattern.permute.xlu0 0
    %97 = vperm.xlu0 %96, %v86
    %v98 = vpop.permute.xlu0 %97
    %99 = vset.pattern.permute.xlu0 0
    %100 = vperm.xlu0 %99, %v87
    %v101 = vpop.permute.xlu0 %100
    %102 = vset.pattern.permute.xlu0 0
    %103 = vperm.xlu0 %102, %v88
    %v104 = vpop.permute.xlu0 %103
    %105 = vset.pattern.permute.xlu0 0
    %106 = vperm.xlu0 %105, %v89
    %v107 = vpop.permute.xlu0 %106
    %108 = vset.pattern.permute.xlu0 0
    %109 = vperm.xlu0 %108, %v90
    %v110 = vpop.permute.xlu0 %109
    %111 = vset.pattern.permute.xlu0 0
    %112 = vperm.xlu0 %111, %v91
    %v113 = vpop.permute.xlu0 %112
    %114 = vset.pattern.permute.xlu0 0
    %115 = vperm.xlu0 %114, %v92
    %v116 = vpop.permute.xlu0 %115
    %117 = vset.pattern.permute.xlu0 0
    %118 = vperm.xlu0 %117, %v93
    %v119 = vpop.permute.xlu0 %118
    %vm120 = vcmp.eq.s32.totalorder %v95, %v98
    %vm121 = vcmp.eq.s32.totalorder %v95, %v101
    %vm122 = vcmp.eq.s32.totalorder %v95, %v104
    %vm123 = vcmp.eq.s32.totalorder %v95, %v107
    %vm124 = vcmp.eq.s32.totalorder %v95, %v110
    %vm125 = vcmp.eq.s32.totalorder %v95, %v113
    %vm126 = vcmp.eq.s32.totalorder %v95, %v116
    %vm127 = vcmp.eq.s32.totalorder %v95, %v119
    %v128 = vsel %vm120, 1, 0
    %v129 = vsel %vm121, 1, 0
    %v130 = vsel %vm122, 1, 0
    %v131 = vsel %vm123, 1, 0
    %v132 = vsel %vm124, 1, 0
    %v133 = vsel %vm125, 1, 0
    %v134 = vsel %vm126, 1, 0
    %v135 = vsel %vm127, 1, 0
    %v136 = vcvt.s32.f32 %v128
    %v137 = vcvt.s32.f32 %v129
    %v138 = vcvt.s32.f32 %v130
    %v139 = vcvt.s32.f32 %v131
    %v140 = vcvt.s32.f32 %v132
    %v141 = vcvt.s32.f32 %v133
    %v142 = vcvt.s32.f32 %v134
    %v143 = vcvt.s32.f32 %v135
    %v144 = vld [vmem:[#allocation5] sm:$0xff]
    %v145 = vld [vmem:[#allocation5 + $0x8] sm:$0xff]
    %v146 = vld [vmem:[#allocation5 + $0x10] sm:$0xff]
    %v147 = vld [vmem:[#allocation5 + $0x18] sm:$0xff]
    %v148 = vld [vmem:[#allocation5 + $0x20] sm:$0xff]
    %v149 = vld [vmem:[#allocation5 + $0x28] sm:$0xff]
    %v150 = vld [vmem:[#allocation5 + $0x30] sm:$0xff]
    %v151 = vld [vmem:[#allocation5 + $0x38] sm:$0xff]
    %v152 = vld [vmem:[#allocation5 + $0x40] sm:$0xff]
    %v153 = vld [vmem:[#allocation5 + $0x48] sm:$0xff]
    %v154 = vld [vmem:[#allocation5 + $0x50] sm:$0xff]
    %v155 = vld [vmem:[#allocation5 + $0x58] sm:$0xff]
    %v156 = vld [vmem:[#allocation5 + $0x60] sm:$0xff]
    %v157 = vld [vmem:[#allocation5 + $0x68] sm:$0xff]
    %v158 = vld [vmem:[#allocation5 + $0x70] sm:$0xff]
    %v159 = vld [vmem:[#allocation5 + $0x78] sm:$0xff]
    %v160 = vld [vmem:[#allocation5 + $0x80] sm:$0xff]
    %v161 = vld [vmem:[#allocation5 + $0x88] sm:$0xff]
    %v162 = vld [vmem:[#allocation5 + $0x90] sm:$0xff]
    %v163 = vld [vmem:[#allocation5 + $0x98] sm:$0xff]
    %v164 = vld [vmem:[#allocation5 + $0xa0] sm:$0xff]
    %v165 = vld [vmem:[#allocation5 + $0xa8] sm:$0xff]
    %v166 = vld [vmem:[#allocation5 + $0xb0] sm:$0xff]
    %v167 = vld [vmem:[#allocation5 + $0xb8] sm:$0xff]
    %v168 = vld [vmem:[#allocation5 + $0xc0] sm:$0xff]
    %v169 = vld [vmem:[#allocation5 + $0xc8] sm:$0xff]
    %v170 = vld [vmem:[#allocation5 + $0xd0] sm:$0xff]
    %v171 = vld [vmem:[#allocation5 + $0xd8] sm:$0xff]
    %v172 = vld [vmem:[#allocation5 + $0xe0] sm:$0xff]
    %v173 = vld [vmem:[#allocation5 + $0xe8] sm:$0xff]
    %v174 = vld [vmem:[#allocation5 + $0xf0] sm:$0xff]
    %v175 = vld [vmem:[#allocation5 + $0xf8] sm:$0xff]
    %v176 = vld [vmem:[#allocation5 + $0x100] sm:$0xff]
    %v177 = vld [vmem:[#allocation5 + $0x108] sm:$0xff]
    %v178 = vld [vmem:[#allocation5 + $0x110] sm:$0xff]
    %v179 = vld [vmem:[#allocation5 + $0x118] sm:$0xff]
    %v180 = vld [vmem:[#allocation5 + $0x120] sm:$0xff]
    %v181 = vld [vmem:[#allocation5 + $0x128] sm:$0xff]
    %v182 = vld [vmem:[#allocation5 + $0x130] sm:$0xff]
    %v183 = vld [vmem:[#allocation5 + $0x138] sm:$0xff]
    %v184 = vld [vmem:[#allocation5 + $0x140] sm:$0xff]
    %v185 = vld [vmem:[#allocation5 + $0x148] sm:$0xff]
    %v186 = vld [vmem:[#allocation5 + $0x150] sm:$0xff]
    %v187 = vld [vmem:[#allocation5 + $0x158] sm:$0xff]
    %v188 = vld [vmem:[#allocation5 + $0x160] sm:$0xff]
    %v189 = vld [vmem:[#allocation5 + $0x168] sm:$0xff]
    %v190 = vld [vmem:[#allocation5 + $0x170] sm:$0xff]
    %v191 = vld [vmem:[#allocation5 + $0x178] sm:$0xff]
    %v192 = vld [vmem:[%s3] sm:$0x7]
    %v194 = vperm.slane %v192, 0
    %v195 = vperm.slane %v192, 1
    %v196 = vperm.slane %v192, 2
    %200 = vmatpush.msra.mxu0 %v189
    %201 = vmatpush.msra.mxu0 %v186
    %202 = vmatpush.msra.mxu0 %v183
    %203 = vmatpush.msra.mxu0 %v180
    %204 = vmatpush.msra.mxu0 %v177
    %205 = vmatpush.msra.mxu0 %v174
    %206 = vmatpush.msra.mxu0 %v171
    %207 = vmatpush.msra.mxu0 %v168
    %208 = vmatpush.msra.mxu0 %v165
    %209 = vmatpush.msra.mxu0 %v162
    %210 = vmatpush.msra.mxu0 %v159
    %211 = vmatpush.msra.mxu0 %v156
    %212 = vmatpush.msra.mxu0 %v153
    %213 = vmatpush.msra.mxu0 %v150
    %214 = vmatpush.msra.mxu0 %v147
    %215 = vmatpush.msra.mxu0 %v144
    %216 = vmatmul.f32.gmra.mxu0 %v136
    %v217 = vpop.f32.mrf.mxu0
    %v218 = vadd.f32 %v194, %v217
    %219 = vmatmul.f32.gmra.mxu0 %v137
    %v220 = vpop.f32.mrf.mxu0
    %v221 = vadd.f32 %v194, %v220
    %222 = vmatmul.f32.gmra.mxu0 %v138
    %v223 = vpop.f32.mrf.mxu0
    %v224 = vadd.f32 %v194, %v223
    %225 = vmatmul.f32.gmra.mxu0 %v139
    %v226 = vpop.f32.mrf.mxu0
    %v227 = vadd.f32 %v194, %v226
    %228 = vmatmul.f32.gmra.mxu0 %v140
    %v229 = vpop.f32.mrf.mxu0
    %v230 = vadd.f32 %v194, %v229
    %231 = vmatmul.f32.gmra.mxu0 %v141
    %v232 = vpop.f32.mrf.mxu0
    %v233 = vadd.f32 %v194, %v232
    %234 = vmatmul.f32.gmra.mxu0 %v142
    %v235 = vpop.f32.mrf.mxu0
    %v236 = vadd.f32 %v194, %v235
    %237 = vmatmul.f32.gmra.mxu0 %v143
    %v238 = vpop.f32.mrf.mxu0
    %v239 = vadd.f32 %v194, %v238
    %240 = vdwg.mxu0
    %241 = vmatpush.msra.mxu0 %v190
    %242 = vmatpush.msra.mxu0 %v187
    %243 = vmatpush.msra.mxu0 %v184
    %244 = vmatpush.msra.mxu0 %v181
    %245 = vmatpush.msra.mxu0 %v178
    %246 = vmatpush.msra.mxu0 %v175
    %247 = vmatpush.msra.mxu0 %v172
    %248 = vmatpush.msra.mxu0 %v169
    %249 = vmatpush.msra.mxu0 %v166
    %250 = vmatpush.msra.mxu0 %v163
    %251 = vmatpush.msra.mxu0 %v160
    %252 = vmatpush.msra.mxu0 %v157
    %253 = vmatpush.msra.mxu0 %v154
    %254 = vmatpush.msra.mxu0 %v151
    %255 = vmatpush.msra.mxu0 %v148
    %256 = vmatpush.msra.mxu0 %v145
    %257 = vmatmul.f32.gmra.mxu0 %v136
    %v258 = vpop.f32.mrf.mxu0
    %v259 = vadd.f32 %v195, %v258
    %260 = vmatmul.f32.gmra.mxu0 %v137
    %v261 = vpop.f32.mrf.mxu0
    %v262 = vadd.f32 %v195, %v261
    %263 = vmatmul.f32.gmra.mxu0 %v138
    %v264 = vpop.f32.mrf.mxu0
    %v265 = vadd.f32 %v195, %v264
    %266 = vmatmul.f32.gmra.mxu0 %v139
    %v267 = vpop.f32.mrf.mxu0
    %v268 = vadd.f32 %v195, %v267
    %269 = vmatmul.f32.gmra.mxu0 %v140
    %v270 = vpop.f32.mrf.mxu0
    %v271 = vadd.f32 %v195, %v270
    %272 = vmatmul.f32.gmra.mxu0 %v141
    %v273 = vpop.f32.mrf.mxu0
    %v274 = vadd.f32 %v195, %v273
    %275 = vmatmul.f32.gmra.mxu0 %v142
    %v276 = vpop.f32.mrf.mxu0
    %v277 = vadd.f32 %v195, %v276
    %278 = vmatmul.f32.gmra.mxu0 %v143
    %v279 = vpop.f32.mrf.mxu0
    %v280 = vadd.f32 %v195, %v279
    %281 = vdwg.mxu0
    %282 = vmatpush.msra.mxu0 %v191
    %283 = vmatpush.msra.mxu0 %v188
    %284 = vmatpush.msra.mxu0 %v185
    %285 = vmatpush.msra.mxu0 %v182
    %286 = vmatpush.msra.mxu0 %v179
    %287 = vmatpush.msra.mxu0 %v176
    %288 = vmatpush.msra.mxu0 %v173
    %289 = vmatpush.msra.mxu0 %v170
    %290 = vmatpush.msra.mxu0 %v167
    %291 = vmatpush.msra.mxu0 %v164
    %292 = vmatpush.msra.mxu0 %v161
    %293 = vmatpush.msra.mxu0 %v158
    %294 = vmatpush.msra.mxu0 %v155
    %295 = vmatpush.msra.mxu0 %v152
    %296 = vmatpush.msra.mxu0 %v149
    %297 = vmatpush.msra.mxu0 %v146
    %298 = vmatmul.f32.gmra.mxu0 %v136
    %v299 = vpop.f32.mrf.mxu0
    %v300 = vadd.f32 %v196, %v299
    %301 = vmatmul.f32.gmra.mxu0 %v137
    %v302 = vpop.f32.mrf.mxu0
    %v303 = vadd.f32 %v196, %v302
    %304 = vmatmul.f32.gmra.mxu0 %v138
    %v305 = vpop.f32.mrf.mxu0
    %v306 = vadd.f32 %v196, %v305
    %307 = vmatmul.f32.gmra.mxu0 %v139
    %v308 = vpop.f32.mrf.mxu0
    %v309 = vadd.f32 %v196, %v308
    %310 = vmatmul.f32.gmra.mxu0 %v140
    %v311 = vpop.f32.mrf.mxu0
    %v312 = vadd.f32 %v196, %v311
    %313 = vmatmul.f32.gmra.mxu0 %v141
    %v314 = vpop.f32.mrf.mxu0
    %v315 = vadd.f32 %v196, %v314
    %316 = vmatmul.f32.gmra.mxu0 %v142
    %v317 = vpop.f32.mrf.mxu0
    %v318 = vadd.f32 %v196, %v317
    %319 = vmatmul.f32.gmra.mxu0 %v143
    %v320 = vpop.f32.mrf.mxu0
    %v321 = vadd.f32 %v196, %v320
    %322 = vdwg.mxu0
    %323 = vst [vmem:[#allocation3] sm:$0xff] %v218
    %324 = vst [vmem:[#allocation3 + $0x8] sm:$0xff] %v259
    %325 = vst [vmem:[#allocation3 + $0x10] sm:$0xff] %v300
    %326 = vst [vmem:[#allocation3 + $0x18] sm:$0xff] %v221
    %327 = vst [vmem:[#allocation3 + $0x20] sm:$0xff] %v262
    %328 = vst [vmem:[#allocation3 + $0x28] sm:$0xff] %v303
    %329 = vst [vmem:[#allocation3 + $0x30] sm:$0xff] %v224
    %330 = vst [vmem:[#allocation3 + $0x38] sm:$0xff] %v265
    %331 = vst [vmem:[#allocation3 + $0x40] sm:$0xff] %v306
    %332 = vst [vmem:[#allocation3 + $0x48] sm:$0xff] %v227
    %333 = vst [vmem:[#allocation3 + $0x50] sm:$0xff] %v268
    %334 = vst [vmem:[#allocation3 + $0x58] sm:$0xff] %v309
    %335 = vst [vmem:[#allocation3 + $0x60] sm:$0xff] %v230
    %336 = vst [vmem:[#allocation3 + $0x68] sm:$0xff] %v271
    %337 = vst [vmem:[#allocation3 + $0x70] sm:$0xff] %v312
    %338 = vst [vmem:[#allocation3 + $0x78] sm:$0xff] %v233
    %339 = vst [vmem:[#allocation3 + $0x80] sm:$0xff] %v274
    %340 = vst [vmem:[#allocation3 + $0x88] sm:$0xff] %v315
    %341 = vst [vmem:[#allocation3 + $0x90] sm:$0xff] %v236
    %342 = vst [vmem:[#allocation3 + $0x98] sm:$0xff] %v277
    %343 = vst [vmem:[#allocation3 + $0xa0] sm:$0xff] %v318
    %344 = vst [vmem:[#allocation3 + $0xa8] sm:$0xff] %v239
    %345 = vst [vmem:[#allocation3 + $0xb0] sm:$0xff] %v280
    %346 = vst [vmem:[#allocation3 + $0xb8] sm:$0xff] %v321
    %v347 = vld [vmem:[#allocation8] sm:$0xff]
    %v348 = vld [vmem:[#allocation8 + $0x8] sm:$0xff]
    %v349 = vld [vmem:[#allocation8 + $0x10] sm:$0xff]
    %v350 = vld [vmem:[#allocation8 + $0x18] sm:$0xff]
    %v351 = vld [vmem:[#allocation8 + $0x20] sm:$0xff]
    %v352 = vld [vmem:[#allocation8 + $0x28] sm:$0xff]
    %v353 = vld [vmem:[#allocation8 + $0x30] sm:$0xff]
    %v354 = vld [vmem:[#allocation8 + $0x38] sm:$0xff]
    %v355 = vld [vmem:[#allocation8 + $0x40] sm:$0xff]
    %v356 = vld [vmem:[#allocation8 + $0x48] sm:$0xff]
    %v357 = vld [vmem:[#allocation8 + $0x50] sm:$0xff]
    %v358 = vld [vmem:[#allocation8 + $0x58] sm:$0xff]
    %v359 = vld [vmem:[#allocation8 + $0x60] sm:$0xff]
    %v360 = vld [vmem:[#allocation8 + $0x68] sm:$0xff]
    %v361 = vld [vmem:[#allocation8 + $0x70] sm:$0xff]
    %v362 = vld [vmem:[#allocation8 + $0x78] sm:$0xff]
    %v363 = vld [vmem:[#allocation8 + $0x80] sm:$0xff]
    %v364 = vld [vmem:[#allocation8 + $0x88] sm:$0xff]
    %v365 = vld [vmem:[#allocation8 + $0x90] sm:$0xff]
    %v366 = vld [vmem:[#allocation8 + $0x98] sm:$0xff]
    %v367 = vld [vmem:[#allocation8 + $0xa0] sm:$0xff]
    %v368 = vld [vmem:[#allocation8 + $0xa8] sm:$0xff]
    %v369 = vld [vmem:[#allocation8 + $0xb0] sm:$0xff]
    %v370 = vld [vmem:[#allocation8 + $0xb8] sm:$0xff]
    %v371 = vld [vmem:[#allocation8 + $0xc0] sm:$0xff]
    %v372 = vld [vmem:[#allocation8 + $0xc8] sm:$0xff]
    %v373 = vld [vmem:[#allocation8 + $0xd0] sm:$0xff]
    %v374 = vld [vmem:[#allocation8 + $0xd8] sm:$0xff]
    %v375 = vld [vmem:[#allocation8 + $0xe0] sm:$0xff]
    %v376 = vld [vmem:[#allocation8 + $0xe8] sm:$0xff]
    %v377 = vld [vmem:[#allocation8 + $0xf0] sm:$0xff]
    %v378 = vld [vmem:[#allocation8 + $0xf8] sm:$0xff]
    %v379 = vld [vmem:[#allocation8 + $0x100] sm:$0xff]
    %v380 = vld [vmem:[#allocation8 + $0x108] sm:$0xff]
    %v381 = vld [vmem:[#allocation8 + $0x110] sm:$0xff]
    %v382 = vld [vmem:[#allocation8 + $0x118] sm:$0xff]
    %v383 = vld [vmem:[#allocation8 + $0x120] sm:$0xff]
    %v384 = vld [vmem:[#allocation8 + $0x128] sm:$0xff]
    %v385 = vld [vmem:[#allocation8 + $0x130] sm:$0xff]
    %v386 = vld [vmem:[#allocation8 + $0x138] sm:$0xff]
    %v387 = vld [vmem:[#allocation8 + $0x140] sm:$0xff]
    %v388 = vld [vmem:[#allocation8 + $0x148] sm:$0xff]
    %v389 = vld [vmem:[#allocation8 + $0x150] sm:$0xff]
    %v390 = vld [vmem:[#allocation8 + $0x158] sm:$0xff]
    %v391 = vld [vmem:[#allocation8 + $0x160] sm:$0xff]
    %v392 = vld [vmem:[#allocation8 + $0x168] sm:$0xff]
    %v393 = vld [vmem:[#allocation8 + $0x170] sm:$0xff]
    %v394 = vld [vmem:[#allocation8 + $0x178] sm:$0xff]
    %v395 = vld [vmem:[%s5] sm:$0x7]
    %v396 = vld [vmem:[#allocation2] sm:$0xff]
    %s397 = smul.u32 0, 3
    %s398 = smul.addr %s397, 8
    %s399 = scalar_lea.vmem [#allocation3], %s398
    %v400 = vld [vmem:[%s399] sm:$0xff]
    %v401 = vld [vmem:[%s399 + $0x8] sm:$0xff]
    %v402 = vld [vmem:[%s399 + $0x10] sm:$0xff]
    %v404 = vperm.slane %v395, 0
    %v405 = vperm.slane %v395, 1
    %v406 = vperm.slane %v395, 2
    %410 = vmatpush.msra.mxu0 %v392
    %411 = vmatpush.msra.mxu0 %v389
    %412 = vmatpush.msra.mxu0 %v386
    %413 = vmatpush.msra.mxu0 %v383
    %414 = vmatpush.msra.mxu0 %v380
    %415 = vmatpush.msra.mxu0 %v377
    %416 = vmatpush.msra.mxu0 %v374
    %417 = vmatpush.msra.mxu0 %v371
    %418 = vmatpush.msra.mxu0 %v368
    %419 = vmatpush.msra.mxu0 %v365
    %420 = vmatpush.msra.mxu0 %v362
    %421 = vmatpush.msra.mxu0 %v359
    %422 = vmatpush.msra.mxu0 %v356
    %423 = vmatpush.msra.mxu0 %v353
    %424 = vmatpush.msra.mxu0 %v350
    %425 = vmatpush.msra.mxu0 %v347
    %426 = vmatmul.f32.gmra.mxu0 %v396
    %v427 = vpop.f32.mrf.mxu0
    %v428 = vadd.f32 %v404, %v427
    %429 = vdwg.mxu0
    %430 = vmatpush.msra.mxu0 %v393
    %431 = vmatpush.msra.mxu0 %v390
    %432 = vmatpush.msra.mxu0 %v387
    %433 = vmatpush.msra.mxu0 %v384
    %434 = vmatpush.msra.mxu0 %v381
    %435 = vmatpush.msra.mxu0 %v378
    %436 = vmatpush.msra.mxu0 %v375
    %437 = vmatpush.msra.mxu0 %v372
    %438 = vmatpush.msra.mxu0 %v369
    %439 = vmatpush.msra.mxu0 %v366
    %440 = vmatpush.msra.mxu0 %v363
    %441 = vmatpush.msra.mxu0 %v360
    %442 = vmatpush.msra.mxu0 %v357
    %443 = vmatpush.msra.mxu0 %v354
    %444 = vmatpush.msra.mxu0 %v351
    %445 = vmatpush.msra.mxu0 %v348
    %446 = vmatmul.f32.gmra.mxu0 %v396
    %v447 = vpop.f32.mrf.mxu0
    %v448 = vadd.f32 %v405, %v447
    %449 = vdwg.mxu0
    %450 = vmatpush.msra.mxu0 %v394
    %451 = vmatpush.msra.mxu0 %v391
    %452 = vmatpush.msra.mxu0 %v388
    %453 = vmatpush.msra.mxu0 %v385
    %454 = vmatpush.msra.mxu0 %v382
    %455 = vmatpush.msra.mxu0 %v379
    %456 = vmatpush.msra.mxu0 %v376
    %457 = vmatpush.msra.mxu0 %v373
    %458 = vmatpush.msra.mxu0 %v370
    %459 = vmatpush.msra.mxu0 %v367
    %460 = vmatpush.msra.mxu0 %v364
    %461 = vmatpush.msra.mxu0 %v361
    %462 = vmatpush.msra.mxu0 %v358
    %463 = vmatpush.msra.mxu0 %v355
    %464 = vmatpush.msra.mxu0 %v352
    %465 = vmatpush.msra.mxu0 %v349
    %466 = vmatmul.f32.gmra.mxu0 %v396
    %v467 = vpop.f32.mrf.mxu0
    %v468 = vadd.f32 %v406, %v467
    %469 = vdwg.mxu0
    %v470 = vadd.f32 %v400, %v428
    %v471 = vxor.u32 %v470, 2147483648
    %v472 = vmul.f32 %v471, 1.442695
    %v473 = vpow.pop %v472
    %v474 = vadd.f32 %v473, 1.0
    %v475 = vrcp.pop %v474
    %v476 = vmul.f32 %v474, %v475
    %v477 = vsub.f32 1.0, %v476
    %v478 = vmul.f32 %v475, %v477
    %v479 = vadd.f32 %v475, %v478
    %vm480 = vweird.f32 %v474
    %vm481 = vweird.f32 %v475
    %vm482 = vmor %vm480, %vm481
    %v483 = vsel %vm482, %v475, %v479
    %v484 = vand.u32 2147483647, %v474
    %vm485 = vcmp.eq.f32.partialorder %v484, 8.507059e+37
    %v486 = vand.u32 %v474, 2147483648
    %v487 = vor.u32 1.1754944e-38, %v486
    %v488 = vsel %vm485, %v487, %v483
    %v489 = vmul.f32 1.0, %v488
    %v490 = vadd.f32 %v401, %v448
    %v491 = vxor.u32 %v490, 2147483648
    %v492 = vmul.f32 %v491, 1.442695
    %v493 = vpow.pop %v492
    %v494 = vadd.f32 %v493, 1.0
    %v495 = vrcp.pop %v494
    %v496 = vmul.f32 %v494, %v495
    %v497 = vsub.f32 1.0, %v496
    %v498 = vmul.f32 %v495, %v497
    %v499 = vadd.f32 %v495, %v498
    %vm500 = vweird.f32 %v494
    %vm501 = vweird.f32 %v495
    %vm502 = vmor %vm500, %vm501
    %v503 = vsel %vm502, %v495, %v499
    %v504 = vand.u32 2147483647, %v494
    %vm505 = vcmp.eq.f32.partialorder %v504, 8.507059e+37
    %v506 = vand.u32 %v494, 2147483648
    %v507 = vor.u32 1.1754944e-38, %v506
    %v508 = vsel %vm505, %v507, %v503
    %v509 = vmul.f32 1.0, %v508
    %v510 = vmul.f32 %v489, %v468
    %v511 = vadd.f32 %v402, %v510
    %v512 = vtanh.pop %v511
    %v513 = vsub.f32 1.0, %v509
    %v514 = vmul.f32 %v513, %v512
    %v515 = vmul.f32 %v509, %v396
    %v516 = vadd.f32 %v514, %v515
    %517 = vst [vmem:[#allocation4] sm:$0xff] %v516
    %s518 = smul.u32 1, 3
    %s519 = smul.addr %s518, 8
    %s520 = scalar_lea.vmem [#allocation3], %s519
    %v521 = vld [vmem:[%s520] sm:$0xff]
    %v522 = vld [vmem:[%s520 + $0x8] sm:$0xff]
    %v523 = vld [vmem:[%s520 + $0x10] sm:$0xff]
    %524 = vmatpush.msra.mxu0 %v392
    %525 = vmatpush.msra.mxu0 %v389
    %526 = vmatpush.msra.mxu0 %v386
    %527 = vmatpush.msra.mxu0 %v383
    %528 = vmatpush.msra.mxu0 %v380
    %529 = vmatpush.msra.mxu0 %v377
    %530 = vmatpush.msra.mxu0 %v374
    %531 = vmatpush.msra.mxu0 %v371
    %532 = vmatpush.msra.mxu0 %v368
    %533 = vmatpush.msra.mxu0 %v365
    %534 = vmatpush.msra.mxu0 %v362
    %535 = vmatpush.msra.mxu0 %v359
    %536 = vmatpush.msra.mxu0 %v356
    %537 = vmatpush.msra.mxu0 %v353
    %538 = vmatpush.msra.mxu0 %v350
    %539 = vmatpush.msra.mxu0 %v347
    %540 = vmatmul.f32.gmra.mxu0 %v516
    %v541 = vpop.f32.mrf.mxu0
    %v542 = vadd.f32 %v404, %v541
    %543 = vdwg.mxu0
    %544 = vmatpush.msra.mxu0 %v393
    %545 = vmatpush.msra.mxu0 %v390
    %546 = vmatpush.msra.mxu0 %v387
    %547 = vmatpush.msra.mxu0 %v384
    %548 = vmatpush.msra.mxu0 %v381
    %549 = vmatpush.msra.mxu0 %v378
    %550 = vmatpush.msra.mxu0 %v375
    %551 = vmatpush.msra.mxu0 %v372
    %552 = vmatpush.msra.mxu0 %v369
    %553 = vmatpush.msra.mxu0 %v366
    %554 = vmatpush.msra.mxu0 %v363
    %555 = vmatpush.msra.mxu0 %v360
    %556 = vmatpush.msra.mxu0 %v357
    %557 = vmatpush.msra.mxu0 %v354
    %558 = vmatpush.msra.mxu0 %v351
    %559 = vmatpush.msra.mxu0 %v348
    %560 = vmatmul.f32.gmra.mxu0 %v516
    %v561 = vpop.f32.mrf.mxu0
    %v562 = vadd.f32 %v405, %v561
    %563 = vdwg.mxu0
    %564 = vmatpush.msra.mxu0 %v394
    %565 = vmatpush.msra.mxu0 %v391
    %566 = vmatpush.msra.mxu0 %v388
    %567 = vmatpush.msra.mxu0 %v385
    %568 = vmatpush.msra.mxu0 %v382
    %569 = vmatpush.msra.mxu0 %v379
    %570 = vmatpush.msra.mxu0 %v376
    %571 = vmatpush.msra.mxu0 %v373
    %572 = vmatpush.msra.mxu0 %v370
    %573 = vmatpush.msra.mxu0 %v367
    %574 = vmatpush.msra.mxu0 %v364
    %575 = vmatpush.msra.mxu0 %v361
    %576 = vmatpush.msra.mxu0 %v358
    %577 = vmatpush.msra.mxu0 %v355
    %578 = vmatpush.msra.mxu0 %v352
    %579 = vmatpush.msra.mxu0 %v349
    %580 = vmatmul.f32.gmra.mxu0 %v516
    %v581 = vpop.f32.mrf.mxu0
    %v582 = vadd.f32 %v406, %v581
    %583 = vdwg.mxu0
    %v584 = vadd.f32 %v521, %v542
    %v585 = vxor.u32 %v584, 2147483648
    %v586 = vmul.f32 %v585, 1.442695
    %v587 = vpow.pop %v586
    %v588 = vadd.f32 %v587, 1.0
    %v589 = vrcp.pop %v588
    %v590 = vmul.f32 %v588, %v589
    %v591 = vsub.f32 1.0, %v590
    %v592 = vmul.f32 %v589, %v591
    %v593 = vadd.f32 %v589, %v592
    %vm594 = vweird.f32 %v588
    %vm595 = vweird.f32 %v589
    %vm596 = vmor %vm594, %vm595
    %v597 = vsel %vm596, %v589, %v593
    %v598 = vand.u32 2147483647, %v588
    %vm599 = vcmp.eq.f32.partialorder %v598, 8.507059e+37
    %v600 = vand.u32 %v588, 2147483648
    %v601 = vor.u32 1.1754944e-38, %v600
    %v602 = vsel %vm599, %v601, %v597
    %v603 = vmul.f32 1.0, %v602
    %v604 = vadd.f32 %v522, %v562
    %v605 = vxor.u32 %v604, 2147483648
    %v606 = vmul.f32 %v605, 1.442695
    %v607 = vpow.pop %v606
    %v608 = vadd.f32 %v607, 1.0
    %v609 = vrcp.pop %v608
    %v610 = vmul.f32 %v608, %v609
    %v611 = vsub.f32 1.0, %v610
    %v612 = vmul.f32 %v609, %v611
    %v613 = vadd.f32 %v609, %v612
    %vm614 = vweird.f32 %v608
    %vm615 = vweird.f32 %v609
    %vm616 = vmor %vm614, %vm615
    %v617 = vsel %vm616, %v609, %v613
    %v618 = vand.u32 2147483647, %v608
    %vm619 = vcmp.eq.f32.partialorder %v618, 8.507059e+37
    %v620 = vand.u32 %v608, 2147483648
    %v621 = vor.u32 1.1754944e-38, %v620
    %v622 = vsel %vm619, %v621, %v617
    %v623 = vmul.f32 1.0, %v622
    %v624 = vmul.f32 %v603, %v582
    %v625 = vadd.f32 %v523, %v624
    %v626 = vtanh.pop %v625
    %v627 = vsub.f32 1.0, %v623
    %v628 = vmul.f32 %v627, %v626
    %v629 = vmul.f32 %v623, %v516
    %v630 = vadd.f32 %v628, %v629
    %s631 = scalar_lea.vmem [#allocation4], 8
    %632 = vst [vmem:[%s631] sm:$0xff] %v630
    %s633 = smul.u32 2, 3
    %s634 = smul.addr %s633, 8
    %s635 = scalar_lea.vmem [#allocation3], %s634
    %v636 = vld [vmem:[%s635] sm:$0xff]
    %v637 = vld [vmem:[%s635 + $0x8] sm:$0xff]
    %v638 = vld [vmem:[%s635 + $0x10] sm:$0xff]
    %639 = vmatpush.msra.mxu0 %v392
    %640 = vmatpush.msra.mxu0 %v389
    %641 = vmatpush.msra.mxu0 %v386
    %642 = vmatpush.msra.mxu0 %v383
    %643 = vmatpush.msra.mxu0 %v380
    %644 = vmatpush.msra.mxu0 %v377
    %645 = vmatpush.msra.mxu0 %v374
    %646 = vmatpush.msra.mxu0 %v371
    %647 = vmatpush.msra.mxu0 %v368
    %648 = vmatpush.msra.mxu0 %v365
    %649 = vmatpush.msra.mxu0 %v362
    %650 = vmatpush.msra.mxu0 %v359
    %651 = vmatpush.msra.mxu0 %v356
    %652 = vmatpush.msra.mxu0 %v353
    %653 = vmatpush.msra.mxu0 %v350
    %654 = vmatpush.msra.mxu0 %v347
    %655 = vmatmul.f32.gmra.mxu0 %v630
    %v656 = vpop.f32.mrf.mxu0
    %v657 = vadd.f32 %v404, %v656
    %658 = vdwg.mxu0
    %659 = vmatpush.msra.mxu0 %v393
    %660 = vmatpush.msra.mxu0 %v390
    %661 = vmatpush.msra.mxu0 %v387
    %662 = vmatpush.msra.mxu0 %v384
    %663 = vmatpush.msra.mxu0 %v381
    %664 = vmatpush.msra.mxu0 %v378
    %665 = vmatpush.msra.mxu0 %v375
    %666 = vmatpush.msra.mxu0 %v372
    %667 = vmatpush.msra.mxu0 %v369
    %668 = vmatpush.msra.mxu0 %v366
    %669 = vmatpush.msra.mxu0 %v363
    %670 = vmatpush.msra.mxu0 %v360
    %671 = vmatpush.msra.mxu0 %v357
    %672 = vmatpush.msra.mxu0 %v354
    %673 = vmatpush.msra.mxu0 %v351
    %674 = vmatpush.msra.mxu0 %v348
    %675 = vmatmul.f32.gmra.mxu0 %v630
    %v676 = vpop.f32.mrf.mxu0
    %v677 = vadd.f32 %v405, %v676
    %678 = vdwg.mxu0
    %679 = vmatpush.msra.mxu0 %v394
    %680 = vmatpush.msra.mxu0 %v391
    %681 = vmatpush.msra.mxu0 %v388
    %682 = vmatpush.msra.mxu0 %v385
    %683 = vmatpush.msra.mxu0 %v382
    %684 = vmatpush.msra.mxu0 %v379
    %685 = vmatpush.msra.mxu0 %v376
    %686 = vmatpush.msra.mxu0 %v373
    %687 = vmatpush.msra.mxu0 %v370
    %688 = vmatpush.msra.mxu0 %v367
    %689 = vmatpush.msra.mxu0 %v364
    %690 = vmatpush.msra.mxu0 %v361
    %691 = vmatpush.msra.mxu0 %v358
    %692 = vmatpush.msra.mxu0 %v355
    %693 = vmatpush.msra.mxu0 %v352
    %694 = vmatpush.msra.mxu0 %v349
    %695 = vmatmul.f32.gmra.mxu0 %v630
    %v696 = vpop.f32.mrf.mxu0
    %v697 = vadd.f32 %v406, %v696
    %698 = vdwg.mxu0
    %v699 = vadd.f32 %v636, %v657
    %v700 = vxor.u32 %v699, 2147483648
    %v701 = vmul.f32 %v700, 1.442695
    %v702 = vpow.pop %v701
    %v703 = vadd.f32 %v702, 1.0
    %v704 = vrcp.pop %v703
    %v705 = vmul.f32 %v703, %v704
    %v706 = vsub.f32 1.0, %v705
    %v707 = vmul.f32 %v704, %v706
    %v708 = vadd.f32 %v704, %v707
    %vm709 = vweird.f32 %v703
    %vm710 = vweird.f32 %v704
    %vm711 = vmor %vm709, %vm710
    %v712 = vsel %vm711, %v704, %v708
    %v713 = vand.u32 2147483647, %v703
    %vm714 = vcmp.eq.f32.partialorder %v713, 8.507059e+37
    %v715 = vand.u32 %v703, 2147483648
    %v716 = vor.u32 1.1754944e-38, %v715
    %v717 = vsel %vm714, %v716, %v712
    %v718 = vmul.f32 1.0, %v717
    %v719 = vadd.f32 %v637, %v677
    %v720 = vxor.u32 %v719, 2147483648
    %v721 = vmul.f32 %v720, 1.442695
    %v722 = vpow.pop %v721
    %v723 = vadd.f32 %v722, 1.0
    %v724 = vrcp.pop %v723
    %v725 = vmul.f32 %v723, %v724
    %v726 = vsub.f32 1.0, %v725
    %v727 = vmul.f32 %v724, %v726
    %v728 = vadd.f32 %v724, %v727
    %vm729 = vweird.f32 %v723
    %vm730 = vweird.f32 %v724
    %vm731 = vmor %vm729, %vm730
    %v732 = vsel %vm731, %v724, %v728
    %v733 = vand.u32 2147483647, %v723
    %vm734 = vcmp.eq.f32.partialorder %v733, 8.507059e+37
    %v735 = vand.u32 %v723, 2147483648
    %v736 = vor.u32 1.1754944e-38, %v735
    %v737 = vsel %vm734, %v736, %v732
    %v738 = vmul.f32 1.0, %v737
    %v739 = vmul.f32 %v718, %v697
    %v740 = vadd.f32 %v638, %v739
    %v741 = vtanh.pop %v740
    %v742 = vsub.f32 1.0, %v738
    %v743 = vmul.f32 %v742, %v741
    %v744 = vmul.f32 %v738, %v630
    %v745 = vadd.f32 %v743, %v744
    %s746 = scalar_lea.vmem [#allocation4], 16
    %747 = vst [vmem:[%s746] sm:$0xff] %v745
    %s748 = smul.u32 3, 3
    %s749 = smul.addr %s748, 8
    %s750 = scalar_lea.vmem [#allocation3], %s749
    %v751 = vld [vmem:[%s750] sm:$0xff]
    %v752 = vld [vmem:[%s750 + $0x8] sm:$0xff]
    %v753 = vld [vmem:[%s750 + $0x10] sm:$0xff]
    %754 = vmatpush.msra.mxu0 %v392
    %755 = vmatpush.msra.mxu0 %v389
    %756 = vmatpush.msra.mxu0 %v386
    %757 = vmatpush.msra.mxu0 %v383
    %758 = vmatpush.msra.mxu0 %v380
    %759 = vmatpush.msra.mxu0 %v377
    %760 = vmatpush.msra.mxu0 %v374
    %761 = vmatpush.msra.mxu0 %v371
    %762 = vmatpush.msra.mxu0 %v368
    %763 = vmatpush.msra.mxu0 %v365
    %764 = vmatpush.msra.mxu0 %v362
    %765 = vmatpush.msra.mxu0 %v359
    %766 = vmatpush.msra.mxu0 %v356
    %767 = vmatpush.msra.mxu0 %v353
    %768 = vmatpush.msra.mxu0 %v350
    %769 = vmatpush.msra.mxu0 %v347
    %770 = vmatmul.f32.gmra.mxu0 %v745
    %v771 = vpop.f32.mrf.mxu0
    %v772 = vadd.f32 %v404, %v771
    %773 = vdwg.mxu0
    %774 = vmatpush.msra.mxu0 %v393
    %775 = vmatpush.msra.mxu0 %v390
    %776 = vmatpush.msra.mxu0 %v387
    %777 = vmatpush.msra.mxu0 %v384
    %778 = vmatpush.msra.mxu0 %v381
    %779 = vmatpush.msra.mxu0 %v378
    %780 = vmatpush.msra.mxu0 %v375
    %781 = vmatpush.msra.mxu0 %v372
    %782 = vmatpush.msra.mxu0 %v369
    %783 = vmatpush.msra.mxu0 %v366
    %784 = vmatpush.msra.mxu0 %v363
    %785 = vmatpush.msra.mxu0 %v360
    %786 = vmatpush.msra.mxu0 %v357
    %787 = vmatpush.msra.mxu0 %v354
    %788 = vmatpush.msra.mxu0 %v351
    %789 = vmatpush.msra.mxu0 %v348
    %790 = vmatmul.f32.gmra.mxu0 %v745
    %v791 = vpop.f32.mrf.mxu0
    %v792 = vadd.f32 %v405, %v791
    %793 = vdwg.mxu0
    %794 = vmatpush.msra.mxu0 %v394
    %795 = vmatpush.msra.mxu0 %v391
    %796 = vmatpush.msra.mxu0 %v388
    %797 = vmatpush.msra.mxu0 %v385
    %798 = vmatpush.msra.mxu0 %v382
    %799 = vmatpush.msra.mxu0 %v379
    %800 = vmatpush.msra.mxu0 %v376
    %801 = vmatpush.msra.mxu0 %v373
    %802 = vmatpush.msra.mxu0 %v370
    %803 = vmatpush.msra.mxu0 %v367
    %804 = vmatpush.msra.mxu0 %v364
    %805 = vmatpush.msra.mxu0 %v361
    %806 = vmatpush.msra.mxu0 %v358
    %807 = vmatpush.msra.mxu0 %v355
    %808 = vmatpush.msra.mxu0 %v352
    %809 = vmatpush.msra.mxu0 %v349
    %810 = vmatmul.f32.gmra.mxu0 %v745
    %v811 = vpop.f32.mrf.mxu0
    %v812 = vadd.f32 %v406, %v811
    %813 = vdwg.mxu0
    %v814 = vadd.f32 %v751, %v772
    %v815 = vxor.u32 %v814, 2147483648
    %v816 = vmul.f32 %v815, 1.442695
    %v817 = vpow.pop %v816
    %v818 = vadd.f32 %v817, 1.0
    %v819 = vrcp.pop %v818
    %v820 = vmul.f32 %v818, %v819
    %v821 = vsub.f32 1.0, %v820
    %v822 = vmul.f32 %v819, %v821
    %v823 = vadd.f32 %v819, %v822
    %vm824 = vweird.f32 %v818
    %vm825 = vweird.f32 %v819
    %vm826 = vmor %vm824, %vm825
    %v827 = vsel %vm826, %v819, %v823
    %v828 = vand.u32 2147483647, %v818
    %vm829 = vcmp.eq.f32.partialorder %v828, 8.507059e+37
    %v830 = vand.u32 %v818, 2147483648
    %v831 = vor.u32 1.1754944e-38, %v830
    %v832 = vsel %vm829, %v831, %v827
    %v833 = vmul.f32 1.0, %v832
    %v834 = vadd.f32 %v752, %v792
    %v835 = vxor.u32 %v834, 2147483648
    %v836 = vmul.f32 %v835, 1.442695
    %v837 = vpow.pop %v836
    %v838 = vadd.f32 %v837, 1.0
    %v839 = vrcp.pop %v838
    %v840 = vmul.f32 %v838, %v839
    %v841 = vsub.f32 1.0, %v840
    %v842 = vmul.f32 %v839, %v841
    %v843 = vadd.f32 %v839, %v842
    %vm844 = vweird.f32 %v838
    %vm845 = vweird.f32 %v839
    %vm846 = vmor %vm844, %vm845
    %v847 = vsel %vm846, %v839, %v843
    %v848 = vand.u32 2147483647, %v838
    %vm849 = vcmp.eq.f32.partialorder %v848, 8.507059e+37
    %v850 = vand.u32 %v838, 2147483648
    %v851 = vor.u32 1.1754944e-38, %v850
    %v852 = vsel %vm849, %v851, %v847
    %v853 = vmul.f32 1.0, %v852
    %v854 = vmul.f32 %v833, %v812
    %v855 = vadd.f32 %v753, %v854
    %v856 = vtanh.pop %v855
    %v857 = vsub.f32 1.0, %v853
    %v858 = vmul.f32 %v857, %v856
    %v859 = vmul.f32 %v853, %v745
    %v860 = vadd.f32 %v858, %v859
    %s861 = scalar_lea.vmem [#allocation4], 24
    %862 = vst [vmem:[%s861] sm:$0xff] %v860
    %s863 = smul.u32 4, 3
    %s864 = smul.addr %s863, 8
    %s865 = scalar_lea.vmem [#allocation3], %s864
    %v866 = vld [vmem:[%s865] sm:$0xff]
    %v867 = vld [vmem:[%s865 + $0x8] sm:$0xff]
    %v868 = vld [vmem:[%s865 + $0x10] sm:$0xff]
    %869 = vmatpush.msra.mxu0 %v392
    %870 = vmatpush.msra.mxu0 %v389
    %871 = vmatpush.msra.mxu0 %v386
    %872 = vmatpush.msra.mxu0 %v383
    %873 = vmatpush.msra.mxu0 %v380
    %874 = vmatpush.msra.mxu0 %v377
    %875 = vmatpush.msra.mxu0 %v374
    %876 = vmatpush.msra.mxu0 %v371
    %877 = vmatpush.msra.mxu0 %v368
    %878 = vmatpush.msra.mxu0 %v365
    %879 = vmatpush.msra.mxu0 %v362
    %880 = vmatpush.msra.mxu0 %v359
    %881 = vmatpush.msra.mxu0 %v356
    %882 = vmatpush.msra.mxu0 %v353
    %883 = vmatpush.msra.mxu0 %v350
    %884 = vmatpush.msra.mxu0 %v347
    %885 = vmatmul.f32.gmra.mxu0 %v860
    %v886 = vpop.f32.mrf.mxu0
    %v887 = vadd.f32 %v404, %v886
    %888 = vdwg.mxu0
    %889 = vmatpush.msra.mxu0 %v393
    %890 = vmatpush.msra.mxu0 %v390
    %891 = vmatpush.msra.mxu0 %v387
    %892 = vmatpush.msra.mxu0 %v384
    %893 = vmatpush.msra.mxu0 %v381
    %894 = vmatpush.msra.mxu0 %v378
    %895 = vmatpush.msra.mxu0 %v375
    %896 = vmatpush.msra.mxu0 %v372
    %897 = vmatpush.msra.mxu0 %v369
    %898 = vmatpush.msra.mxu0 %v366
    %899 = vmatpush.msra.mxu0 %v363
    %900 = vmatpush.msra.mxu0 %v360
    %901 = vmatpush.msra.mxu0 %v357
    %902 = vmatpush.msra.mxu0 %v354
    %903 = vmatpush.msra.mxu0 %v351
    %904 = vmatpush.msra.mxu0 %v348
    %905 = vmatmul.f32.gmra.mxu0 %v860
    %v906 = vpop.f32.mrf.mxu0
    %v907 = vadd.f32 %v405, %v906
    %908 = vdwg.mxu0
    %909 = vmatpush.msra.mxu0 %v394
    %910 = vmatpush.msra.mxu0 %v391
    %911 = vmatpush.msra.mxu0 %v388
    %912 = vmatpush.msra.mxu0 %v385
    %913 = vmatpush.msra.mxu0 %v382
    %914 = vmatpush.msra.mxu0 %v379
    %915 = vmatpush.msra.mxu0 %v376
    %916 = vmatpush.msra.mxu0 %v373
    %917 = vmatpush.msra.mxu0 %v370
    %918 = vmatpush.msra.mxu0 %v367
    %919 = vmatpush.msra.mxu0 %v364
    %920 = vmatpush.msra.mxu0 %v361
    %921 = vmatpush.msra.mxu0 %v358
    %922 = vmatpush.msra.mxu0 %v355
    %923 = vmatpush.msra.mxu0 %v352
    %924 = vmatpush.msra.mxu0 %v349
    %925 = vmatmul.f32.gmra.mxu0 %v860
    %v926 = vpop.f32.mrf.mxu0
    %v927 = vadd.f32 %v406, %v926
    %928 = vdwg.mxu0
    %v929 = vadd.f32 %v866, %v887
    %v930 = vxor.u32 %v929, 2147483648
    %v931 = vmul.f32 %v930, 1.442695
    %v932 = vpow.pop %v931
    %v933 = vadd.f32 %v932, 1.0
    %v934 = vrcp.pop %v933
    %v935 = vmul.f32 %v933, %v934
    %v936 = vsub.f32 1.0, %v935
    %v937 = vmul.f32 %v934, %v936
    %v938 = vadd.f32 %v934, %v937
    %vm939 = vweird.f32 %v933
    %vm940 = vweird.f32 %v934
    %vm941 = vmor %vm939, %vm940
    %v942 = vsel %vm941, %v934, %v938
    %v943 = vand.u32 2147483647, %v933
    %vm944 = vcmp.eq.f32.partialorder %v943, 8.507059e+37
    %v945 = vand.u32 %v933, 2147483648
    %v946 = vor.u32 1.1754944e-38, %v945
    %v947 = vsel %vm944, %v946, %v942
    %v948 = vmul.f32 1.0, %v947
    %v949 = vadd.f32 %v867, %v907
    %v950 = vxor.u32 %v949, 2147483648
    %v951 = vmul.f32 %v950, 1.442695
    %v952 = vpow.pop %v951
    %v953 = vadd.f32 %v952, 1.0
    %v954 = vrcp.pop %v953
    %v955 = vmul.f32 %v953, %v954
    %v956 = vsub.f32 1.0, %v955
    %v957 = vmul.f32 %v954, %v956
    %v958 = vadd.f32 %v954, %v957
    %vm959 = vweird.f32 %v953
    %vm960 = vweird.f32 %v954
    %vm961 = vmor %vm959, %vm960
    %v962 = vsel %vm961, %v954, %v958
    %v963 = vand.u32 2147483647, %v953
    %vm964 = vcmp.eq.f32.partialorder %v963, 8.507059e+37
    %v965 = vand.u32 %v953, 2147483648
    %v966 = vor.u32 1.1754944e-38, %v965
    %v967 = vsel %vm964, %v966, %v962
    %v968 = vmul.f32 1.0, %v967
    %v969 = vmul.f32 %v948, %v927
    %v970 = vadd.f32 %v868, %v969
    %v971 = vtanh.pop %v970
    %v972 = vsub.f32 1.0, %v968
    %v973 = vmul.f32 %v972, %v971
    %v974 = vmul.f32 %v968, %v860
    %v975 = vadd.f32 %v973, %v974
    %s976 = scalar_lea.vmem [#allocation4], 32
    %977 = vst [vmem:[%s976] sm:$0xff] %v975
    %s978 = smul.u32 5, 3
    %s979 = smul.addr %s978, 8
    %s980 = scalar_lea.vmem [#allocation3], %s979
    %v981 = vld [vmem:[%s980] sm:$0xff]
    %v982 = vld [vmem:[%s980 + $0x8] sm:$0xff]
    %v983 = vld [vmem:[%s980 + $0x10] sm:$0xff]
    %984 = vmatpush.msra.mxu0 %v392
    %985 = vmatpush.msra.mxu0 %v389
    %986 = vmatpush.msra.mxu0 %v386
    %987 = vmatpush.msra.mxu0 %v383
    %988 = vmatpush.msra.mxu0 %v380
    %989 = vmatpush.msra.mxu0 %v377
    %990 = vmatpush.msra.mxu0 %v374
    %991 = vmatpush.msra.mxu0 %v371
    %992 = vmatpush.msra.mxu0 %v368
    %993 = vmatpush.msra.mxu0 %v365
    %994 = vmatpush.msra.mxu0 %v362
    %995 = vmatpush.msra.mxu0 %v359
    %996 = vmatpush.msra.mxu0 %v356
    %997 = vmatpush.msra.mxu0 %v353
    %998 = vmatpush.msra.mxu0 %v350
    %999 = vmatpush.msra.mxu0 %v347
    %1000 = vmatmul.f32.gmra.mxu0 %v975
    %v1001 = vpop.f32.mrf.mxu0
    %v1002 = vadd.f32 %v404, %v1001
    %1003 = vdwg.mxu0
    %1004 = vmatpush.msra.mxu0 %v393
    %1005 = vmatpush.msra.mxu0 %v390
    %1006 = vmatpush.msra.mxu0 %v387
    %1007 = vmatpush.msra.mxu0 %v384
    %1008 = vmatpush.msra.mxu0 %v381
    %1009 = vmatpush.msra.mxu0 %v378
    %1010 = vmatpush.msra.mxu0 %v375
    %1011 = vmatpush.msra.mxu0 %v372
    %1012 = vmatpush.msra.mxu0 %v369
    %1013 = vmatpush.msra.mxu0 %v366
    %1014 = vmatpush.msra.mxu0 %v363
    %1015 = vmatpush.msra.mxu0 %v360
    %1016 = vmatpush.msra.mxu0 %v357
    %1017 = vmatpush.msra.mxu0 %v354
    %1018 = vmatpush.msra.mxu0 %v351
    %1019 = vmatpush.msra.mxu0 %v348
    %1020 = vmatmul.f32.gmra.mxu0 %v975
    %v1021 = vpop.f32.mrf.mxu0
    %v1022 = vadd.f32 %v405, %v1021
    %1023 = vdwg.mxu0
    %1024 = vmatpush.msra.mxu0 %v394
    %1025 = vmatpush.msra.mxu0 %v391
    %1026 = vmatpush.msra.mxu0 %v388
    %1027 = vmatpush.msra.mxu0 %v385
    %1028 = vmatpush.msra.mxu0 %v382
    %1029 = vmatpush.msra.mxu0 %v379
    %1030 = vmatpush.msra.mxu0 %v376
    %1031 = vmatpush.msra.mxu0 %v373
    %1032 = vmatpush.msra.mxu0 %v370
    %1033 = vmatpush.msra.mxu0 %v367
    %1034 = vmatpush.msra.mxu0 %v364
    %1035 = vmatpush.msra.mxu0 %v361
    %1036 = vmatpush.msra.mxu0 %v358
    %1037 = vmatpush.msra.mxu0 %v355
    %1038 = vmatpush.msra.mxu0 %v352
    %1039 = vmatpush.msra.mxu0 %v349
    %1040 = vmatmul.f32.gmra.mxu0 %v975
    %v1041 = vpop.f32.mrf.mxu0
    %v1042 = vadd.f32 %v406, %v1041
    %1043 = vdwg.mxu0
    %v1044 = vadd.f32 %v981, %v1002
    %v1045 = vxor.u32 %v1044, 2147483648
    %v1046 = vmul.f32 %v1045, 1.442695
    %v1047 = vpow.pop %v1046
    %v1048 = vadd.f32 %v1047, 1.0
    %v1049 = vrcp.pop %v1048
    %v1050 = vmul.f32 %v1048, %v1049
    %v1051 = vsub.f32 1.0, %v1050
    %v1052 = vmul.f32 %v1049, %v1051
    %v1053 = vadd.f32 %v1049, %v1052
    %vm1054 = vweird.f32 %v1048
    %vm1055 = vweird.f32 %v1049
    %vm1056 = vmor %vm1054, %vm1055
    %v1057 = vsel %vm1056, %v1049, %v1053
    %v1058 = vand.u32 2147483647, %v1048
    %vm1059 = vcmp.eq.f32.partialorder %v1058, 8.507059e+37
    %v1060 = vand.u32 %v1048, 2147483648
    %v1061 = vor.u32 1.1754944e-38, %v1060
    %v1062 = vsel %vm1059, %v1061, %v1057
    %v1063 = vmul.f32 1.0, %v1062
    %v1064 = vadd.f32 %v982, %v1022
    %v1065 = vxor.u32 %v1064, 2147483648
    %v1066 = vmul.f32 %v1065, 1.442695
    %v1067 = vpow.pop %v1066
    %v1068 = vadd.f32 %v1067, 1.0
    %v1069 = vrcp.pop %v1068
    %v1070 = vmul.f32 %v1068, %v1069
    %v1071 = vsub.f32 1.0, %v1070
    %v1072 = vmul.f32 %v1069, %v1071
    %v1073 = vadd.f32 %v1069, %v1072
    %vm1074 = vweird.f32 %v1068
    %vm1075 = vweird.f32 %v1069
    %vm1076 = vmor %vm1074, %vm1075
    %v1077 = vsel %vm1076, %v1069, %v1073
    %v1078 = vand.u32 2147483647, %v1068
    %vm1079 = vcmp.eq.f32.partialorder %v1078, 8.507059e+37
    %v1080 = vand.u32 %v1068, 2147483648
    %v1081 = vor.u32 1.1754944e-38, %v1080
    %v1082 = vsel %vm1079, %v1081, %v1077
    %v1083 = vmul.f32 1.0, %v1082
    %v1084 = vmul.f32 %v1063, %v1042
    %v1085 = vadd.f32 %v983, %v1084
    %v1086 = vtanh.pop %v1085
    %v1087 = vsub.f32 1.0, %v1083
    %v1088 = vmul.f32 %v1087, %v1086
    %v1089 = vmul.f32 %v1083, %v975
    %v1090 = vadd.f32 %v1088, %v1089
    %s1091 = scalar_lea.vmem [#allocation4], 40
    %1092 = vst [vmem:[%s1091] sm:$0xff] %v1090
    %s1093 = smul.u32 6, 3
    %s1094 = smul.addr %s1093, 8
    %s1095 = scalar_lea.vmem [#allocation3], %s1094
    %v1096 = vld [vmem:[%s1095] sm:$0xff]
    %v1097 = vld [vmem:[%s1095 + $0x8] sm:$0xff]
    %v1098 = vld [vmem:[%s1095 + $0x10] sm:$0xff]
    %1099 = vmatpush.msra.mxu0 %v392
    %1100 = vmatpush.msra.mxu0 %v389
    %1101 = vmatpush.msra.mxu0 %v386
    %1102 = vmatpush.msra.mxu0 %v383
    %1103 = vmatpush.msra.mxu0 %v380
    %1104 = vmatpush.msra.mxu0 %v377
    %1105 = vmatpush.msra.mxu0 %v374
    %1106 = vmatpush.msra.mxu0 %v371
    %1107 = vmatpush.msra.mxu0 %v368
    %1108 = vmatpush.msra.mxu0 %v365
    %1109 = vmatpush.msra.mxu0 %v362
    %1110 = vmatpush.msra.mxu0 %v359
    %1111 = vmatpush.msra.mxu0 %v356
    %1112 = vmatpush.msra.mxu0 %v353
    %1113 = vmatpush.msra.mxu0 %v350
    %1114 = vmatpush.msra.mxu0 %v347
    %1115 = vmatmul.f32.gmra.mxu0 %v1090
    %v1116 = vpop.f32.mrf.mxu0
    %v1117 = vadd.f32 %v404, %v1116
    %1118 = vdwg.mxu0
    %1119 = vmatpush.msra.mxu0 %v393
    %1120 = vmatpush.msra.mxu0 %v390
    %1121 = vmatpush.msra.mxu0 %v387
    %1122 = vmatpush.msra.mxu0 %v384
    %1123 = vmatpush.msra.mxu0 %v381
    %1124 = vmatpush.msra.mxu0 %v378
    %1125 = vmatpush.msra.mxu0 %v375
    %1126 = vmatpush.msra.mxu0 %v372
    %1127 = vmatpush.msra.mxu0 %v369
    %1128 = vmatpush.msra.mxu0 %v366
    %1129 = vmatpush.msra.mxu0 %v363
    %1130 = vmatpush.msra.mxu0 %v360
    %1131 = vmatpush.msra.mxu0 %v357
    %1132 = vmatpush.msra.mxu0 %v354
    %1133 = vmatpush.msra.mxu0 %v351
    %1134 = vmatpush.msra.mxu0 %v348
    %1135 = vmatmul.f32.gmra.mxu0 %v1090
    %v1136 = vpop.f32.mrf.mxu0
    %v1137 = vadd.f32 %v405, %v1136
    %1138 = vdwg.mxu0
    %1139 = vmatpush.msra.mxu0 %v394
    %1140 = vmatpush.msra.mxu0 %v391
    %1141 = vmatpush.msra.mxu0 %v388
    %1142 = vmatpush.msra.mxu0 %v385
    %1143 = vmatpush.msra.mxu0 %v382
    %1144 = vmatpush.msra.mxu0 %v379
    %1145 = vmatpush.msra.mxu0 %v376
    %1146 = vmatpush.msra.mxu0 %v373
    %1147 = vmatpush.msra.mxu0 %v370
    %1148 = vmatpush.msra.mxu0 %v367
    %1149 = vmatpush.msra.mxu0 %v364
    %1150 = vmatpush.msra.mxu0 %v361
    %1151 = vmatpush.msra.mxu0 %v358
    %1152 = vmatpush.msra.mxu0 %v355
    %1153 = vmatpush.msra.mxu0 %v352
    %1154 = vmatpush.msra.mxu0 %v349
    %1155 = vmatmul.f32.gmra.mxu0 %v1090
    %v1156 = vpop.f32.mrf.mxu0
    %v1157 = vadd.f32 %v406, %v1156
    %1158 = vdwg.mxu0
    %v1159 = vadd.f32 %v1096, %v1117
    %v1160 = vxor.u32 %v1159, 2147483648
    %v1161 = vmul.f32 %v1160, 1.442695
    %v1162 = vpow.pop %v1161
    %v1163 = vadd.f32 %v1162, 1.0
    %v1164 = vrcp.pop %v1163
    %v1165 = vmul.f32 %v1163, %v1164
    %v1166 = vsub.f32 1.0, %v1165
    %v1167 = vmul.f32 %v1164, %v1166
    %v1168 = vadd.f32 %v1164, %v1167
    %vm1169 = vweird.f32 %v1163
    %vm1170 = vweird.f32 %v1164
    %vm1171 = vmor %vm1169, %vm1170
    %v1172 = vsel %vm1171, %v1164, %v1168
    %v1173 = vand.u32 2147483647, %v1163
    %vm1174 = vcmp.eq.f32.partialorder %v1173, 8.507059e+37
    %v1175 = vand.u32 %v1163, 2147483648
    %v1176 = vor.u32 1.1754944e-38, %v1175
    %v1177 = vsel %vm1174, %v1176, %v1172
    %v1178 = vmul.f32 1.0, %v1177
    %v1179 = vadd.f32 %v1097, %v1137
    %v1180 = vxor.u32 %v1179, 2147483648
    %v1181 = vmul.f32 %v1180, 1.442695
    %v1182 = vpow.pop %v1181
    %v1183 = vadd.f32 %v1182, 1.0
    %v1184 = vrcp.pop %v1183
    %v1185 = vmul.f32 %v1183, %v1184
    %v1186 = vsub.f32 1.0, %v1185
    %v1187 = vmul.f32 %v1184, %v1186
    %v1188 = vadd.f32 %v1184, %v1187
    %vm1189 = vweird.f32 %v1183
    %vm1190 = vweird.f32 %v1184
    %vm1191 = vmor %vm1189, %vm1190
    %v1192 = vsel %vm1191, %v1184, %v1188
    %v1193 = vand.u32 2147483647, %v1183
    %vm1194 = vcmp.eq.f32.partialorder %v1193, 8.507059e+37
    %v1195 = vand.u32 %v1183, 2147483648
    %v1196 = vor.u32 1.1754944e-38, %v1195
    %v1197 = vsel %vm1194, %v1196, %v1192
    %v1198 = vmul.f32 1.0, %v1197
    %v1199 = vmul.f32 %v1178, %v1157
    %v1200 = vadd.f32 %v1098, %v1199
    %v1201 = vtanh.pop %v1200
    %v1202 = vsub.f32 1.0, %v1198
    %v1203 = vmul.f32 %v1202, %v1201
    %v1204 = vmul.f32 %v1198, %v1090
    %v1205 = vadd.f32 %v1203, %v1204
    %s1206 = scalar_lea.vmem [#allocation4], 48
    %1207 = vst [vmem:[%s1206] sm:$0xff] %v1205
    %s1208 = smul.u32 7, 3
    %s1209 = smul.addr %s1208, 8
    %s1210 = scalar_lea.vmem [#allocation3], %s1209
    %v1211 = vld [vmem:[%s1210] sm:$0xff]
    %v1212 = vld [vmem:[%s1210 + $0x8] sm:$0xff]
    %v1213 = vld [vmem:[%s1210 + $0x10] sm:$0xff]
    %1214 = vmatpush.msra.mxu0 %v392
    %1215 = vmatpush.msra.mxu0 %v389
    %1216 = vmatpush.msra.mxu0 %v386
    %1217 = vmatpush.msra.mxu0 %v383
    %1218 = vmatpush.msra.mxu0 %v380
    %1219 = vmatpush.msra.mxu0 %v377
    %1220 = vmatpush.msra.mxu0 %v374
    %1221 = vmatpush.msra.mxu0 %v371
    %1222 = vmatpush.msra.mxu0 %v368
    %1223 = vmatpush.msra.mxu0 %v365
    %1224 = vmatpush.msra.mxu0 %v362
    %1225 = vmatpush.msra.mxu0 %v359
    %1226 = vmatpush.msra.mxu0 %v356
    %1227 = vmatpush.msra.mxu0 %v353
    %1228 = vmatpush.msra.mxu0 %v350
    %1229 = vmatpush.msra.mxu0 %v347
    %1230 = vmatmul.f32.gmra.mxu0 %v1205
    %v1231 = vpop.f32.mrf.mxu0
    %v1232 = vadd.f32 %v404, %v1231
    %1233 = vdwg.mxu0
    %1234 = vmatpush.msra.mxu0 %v393
    %1235 = vmatpush.msra.mxu0 %v390
    %1236 = vmatpush.msra.mxu0 %v387
    %1237 = vmatpush.msra.mxu0 %v384
    %1238 = vmatpush.msra.mxu0 %v381
    %1239 = vmatpush.msra.mxu0 %v378
    %1240 = vmatpush.msra.mxu0 %v375
    %1241 = vmatpush.msra.mxu0 %v372
    %1242 = vmatpush.msra.mxu0 %v369
    %1243 = vmatpush.msra.mxu0 %v366
    %1244 = vmatpush.msra.mxu0 %v363
    %1245 = vmatpush.msra.mxu0 %v360
    %1246 = vmatpush.msra.mxu0 %v357
    %1247 = vmatpush.msra.mxu0 %v354
    %1248 = vmatpush.msra.mxu0 %v351
    %1249 = vmatpush.msra.mxu0 %v348
    %1250 = vmatmul.f32.gmra.mxu0 %v1205
    %v1251 = vpop.f32.mrf.mxu0
    %v1252 = vadd.f32 %v405, %v1251
    %1253 = vdwg.mxu0
    %1254 = vmatpush.msra.mxu0 %v394
    %1255 = vmatpush.msra.mxu0 %v391
    %1256 = vmatpush.msra.mxu0 %v388
    %1257 = vmatpush.msra.mxu0 %v385
    %1258 = vmatpush.msra.mxu0 %v382
    %1259 = vmatpush.msra.mxu0 %v379
    %1260 = vmatpush.msra.mxu0 %v376
    %1261 = vmatpush.msra.mxu0 %v373
    %1262 = vmatpush.msra.mxu0 %v370
    %1263 = vmatpush.msra.mxu0 %v367
    %1264 = vmatpush.msra.mxu0 %v364
    %1265 = vmatpush.msra.mxu0 %v361
    %1266 = vmatpush.msra.mxu0 %v358
    %1267 = vmatpush.msra.mxu0 %v355
    %1268 = vmatpush.msra.mxu0 %v352
    %1269 = vmatpush.msra.mxu0 %v349
    %1270 = vmatmul.f32.gmra.mxu0 %v1205
    %v1271 = vpop.f32.mrf.mxu0
    %v1272 = vadd.f32 %v406, %v1271
    %1273 = vdwg.mxu0
    %v1274 = vadd.f32 %v1211, %v1232
    %v1275 = vxor.u32 %v1274, 2147483648
    %v1276 = vmul.f32 %v1275, 1.442695
    %v1277 = vpow.pop %v1276
    %v1278 = vadd.f32 %v1277, 1.0
    %v1279 = vrcp.pop %v1278
    %v1280 = vmul.f32 %v1278, %v1279
    %v1281 = vsub.f32 1.0, %v1280
    %v1282 = vmul.f32 %v1279, %v1281
    %v1283 = vadd.f32 %v1279, %v1282
    %vm1284 = vweird.f32 %v1278
    %vm1285 = vweird.f32 %v1279
    %vm1286 = vmor %vm1284, %vm1285
    %v1287 = vsel %vm1286, %v1279, %v1283
    %v1288 = vand.u32 2147483647, %v1278
    %vm1289 = vcmp.eq.f32.partialorder %v1288, 8.507059e+37
    %v1290 = vand.u32 %v1278, 2147483648
    %v1291 = vor.u32 1.1754944e-38, %v1290
    %v1292 = vsel %vm1289, %v1291, %v1287
    %v1293 = vmul.f32 1.0, %v1292
    %v1294 = vadd.f32 %v1212, %v1252
    %v1295 = vxor.u32 %v1294, 2147483648
    %v1296 = vmul.f32 %v1295, 1.442695
    %v1297 = vpow.pop %v1296
    %v1298 = vadd.f32 %v1297, 1.0
    %v1299 = vrcp.pop %v1298
    %v1300 = vmul.f32 %v1298, %v1299
    %v1301 = vsub.f32 1.0, %v1300
    %v1302 = vmul.f32 %v1299, %v1301
    %v1303 = vadd.f32 %v1299, %v1302
    %vm1304 = vweird.f32 %v1298
    %vm1305 = vweird.f32 %v1299
    %vm1306 = vmor %vm1304, %vm1305
    %v1307 = vsel %vm1306, %v1299, %v1303
    %v1308 = vand.u32 2147483647, %v1298
    %vm1309 = vcmp.eq.f32.partialorder %v1308, 8.507059e+37
    %v1310 = vand.u32 %v1298, 2147483648
    %v1311 = vor.u32 1.1754944e-38, %v1310
    %v1312 = vsel %vm1309, %v1311, %v1307
    %v1313 = vmul.f32 1.0, %v1312
    %v1314 = vmul.f32 %v1293, %v1272
    %v1315 = vadd.f32 %v1213, %v1314
    %v1316 = vtanh.pop %v1315
    %v1317 = vsub.f32 1.0, %v1313
    %v1318 = vmul.f32 %v1317, %v1316
    %v1319 = vmul.f32 %v1313, %v1205
    %v1320 = vadd.f32 %v1318, %v1319
    %s1321 = scalar_lea.vmem [#allocation4], 56
    %1322 = vst [vmem:[%s1321] sm:$0xff] %v1320
    %1323 = vst [vmem:[#allocation2] sm:$0xff] %v1320
    %1324 = vst [vmem:[#allocation12] sm:$0xff] %v1320
    %v1325 = vld [vmem:[#allocation4] sm:$0xff]
    %v1326 = vld [vmem:[#allocation4 + $0x8] sm:$0xff]
    %v1327 = vld [vmem:[#allocation4 + $0x10] sm:$0xff]
    %v1328 = vld [vmem:[#allocation4 + $0x18] sm:$0xff]
    %v1329 = vld [vmem:[#allocation4 + $0x20] sm:$0xff]
    %v1330 = vld [vmem:[#allocation4 + $0x28] sm:$0xff]
    %v1331 = vld [vmem:[#allocation4 + $0x30] sm:$0xff]
    %v1332 = vld [vmem:[#allocation4 + $0x38] sm:$0xff]
    %v1333 = vld [vmem:[#allocation10] sm:$0xff]
    %v1334 = vld [vmem:[#allocation10 + $0x8] sm:$0xff]
    %v1335 = vld [vmem:[#allocation10 + $0x10] sm:$0xff]
    %v1336 = vld [vmem:[#allocation10 + $0x18] sm:$0xff]
    %v1337 = vld [vmem:[#allocation10 + $0x20] sm:$0xff]
    %v1338 = vld [vmem:[#allocation10 + $0x28] sm:$0xff]
    %v1339 = vld [vmem:[#allocation10 + $0x30] sm:$0xff]
    %v1340 = vld [vmem:[#allocation10 + $0x38] sm:$0xff]
    %v1341 = vld [vmem:[#allocation10 + $0x40] sm:$0xff]
    %v1342 = vld [vmem:[#allocation10 + $0x48] sm:$0xff]
    %v1343 = vld [vmem:[#allocation10 + $0x50] sm:$0xff]
    %v1344 = vld [vmem:[#allocation10 + $0x58] sm:$0xff]
    %v1345 = vld [vmem:[#allocation10 + $0x60] sm:$0xff]
    %v1346 = vld [vmem:[#allocation10 + $0x68] sm:$0xff]
    %v1347 = vld [vmem:[#allocation10 + $0x70] sm:$0xff]
    %v1348 = vld [vmem:[#allocation10 + $0x78] sm:$0xff]
    %v1349 = vld [vmem:[%s7] sm:$0x1]
    %v1351 = vperm.slane %v1349, 0
    %1353 = vmatpush.msra.mxu0 %v1348
    %1354 = vmatpush.msra.mxu0 %v1347
    %1355 = vmatpush.msra.mxu0 %v1346
    %1356 = vmatpush.msra.mxu0 %v1345
    %1357 = vmatpush.msra.mxu0 %v1344
    %1358 = vmatpush.msra.mxu0 %v1343
    %1359 = vmatpush.msra.mxu0 %v1342
    %1360 = vmatpush.msra.mxu0 %v1341
    %1361 = vmatpush.msra.mxu0 %v1340
    %1362 = vmatpush.msra.mxu0 %v1339
    %1363 = vmatpush.msra.mxu0 %v1338
    %1364 = vmatpush.msra.mxu0 %v1337
    %1365 = vmatpush.msra.mxu0 %v1336
    %1366 = vmatpush.msra.mxu0 %v1335
    %1367 = vmatpush.msra.mxu0 %v1334
    %1368 = vmatpush.msra.mxu0 %v1333
    %1369 = vmatmul.f32.gmra.mxu0 %v1325
    %v1370 = vpop.f32.mrf.mxu0
    %v1371 = vadd.f32 %v1351, %v1370
    %1372 = vmatmul.f32.gmra.mxu0 %v1326
    %v1373 = vpop.f32.mrf.mxu0
    %v1374 = vadd.f32 %v1351, %v1373
    %1375 = vmatmul.f32.gmra.mxu0 %v1327
    %v1376 = vpop.f32.mrf.mxu0
    %v1377 = vadd.f32 %v1351, %v1376
    %1378 = vmatmul.f32.gmra.mxu0 %v1328
    %v1379 = vpop.f32.mrf.mxu0
    %v1380 = vadd.f32 %v1351, %v1379
    %1381 = vmatmul.f32.gmra.mxu0 %v1329
    %v1382 = vpop.f32.mrf.mxu0
    %v1383 = vadd.f32 %v1351, %v1382
    %1384 = vmatmul.f32.gmra.mxu0 %v1330
    %v1385 = vpop.f32.mrf.mxu0
    %v1386 = vadd.f32 %v1351, %v1385
    %1387 = vmatmul.f32.gmra.mxu0 %v1331
    %v1388 = vpop.f32.mrf.mxu0
    %v1389 = vadd.f32 %v1351, %v1388
    %1390 = vmatmul.f32.gmra.mxu0 %v1332
    %v1391 = vpop.f32.mrf.mxu0
    %v1392 = vadd.f32 %v1351, %v1391
    %1393 = vdwg.mxu0
    %1394 = vst [vmem:[#allocation11] sm:$0xff] %v1371
    %1395 = vst [vmem:[#allocation11 + $0x8] sm:$0xff] %v1374
    %1396 = vst [vmem:[#allocation11 + $0x10] sm:$0xff] %v1377
    %1397 = vst [vmem:[#allocation11 + $0x18] sm:$0xff] %v1380
    %1398 = vst [vmem:[#allocation11 + $0x20] sm:$0xff] %v1383
    %1399 = vst [vmem:[#allocation11 + $0x28] sm:$0xff] %v1386
    %1400 = vst [vmem:[#allocation11 + $0x30] sm:$0xff] %v1389
    %1401 = vst [vmem:[#allocation11 + $0x38] sm:$0xff] %v1392
    // Predicated region
    $region50: #{tpu_custom_call.1} parent=1 // pred_check
      _
    $region51: #{tpu_custom_call.1} parent=1 // pred_check_branch
      %1403 = sbr.rel (0) target = $region53
    $region52: #{tpu_custom_call.1} parent=1 // pred_region
      %1405 = vsyncadd [#allocation7], 0
      %s1406 = sshll.u32 [#allocation11], 4
      %s1407 = int_to_ptr.vmem [resolvable:$true] %s1406
      %s1408 = sshll.u32 %s8, 4
      %s1409 = int_to_ptr.hbm [resolvable:$true] %s1408
      %1414 = dma.vmem_to_hbm [thread:$0]  %s1407, 1024, %s1409, [#allocation7], 128, 128, 8
    $region53: #{tpu_custom_call.1} parent=1 // pred_fallthru
      _
    // Predicated region
    $region54: #{tpu_custom_call.1} parent=1 // pred_check
      _
    $region55: #{tpu_custom_call.1} parent=1 // pred_check_branch
      %1416 = sbr.rel (0) target = $region57
    $region56: #{tpu_custom_call.1} parent=1 // pred_region
      %1418 = vsyncadd [#allocation13], 0
      %s1420 = sshll.u32 [#allocation12], 4
      %s1421 = int_to_ptr.vmem [resolvable:$true] %s1420
      %s1422 = sshll.u32 %s9, 4
      %s1423 = int_to_ptr.hbm [resolvable:$true] %s1422
      %1425 = dma.vmem_to_hbm [thread:$0]  %s1421, 128, %s1423, [#allocation13]
    $region57: #{tpu_custom_call.1} parent=1 // pred_fallthru
      _
    // Predicated region
    $region58: #{tpu_custom_call.1} parent=1 // pred_check
      _
    $region59: #{tpu_custom_call.1} parent=1 // pred_check_branch
      %1427 = sbr.rel (0) target = $region61
    $region60: #{tpu_custom_call.1} parent=1 // pred_region
      %1429 = dma.done [#allocation7], 1024
    $region61: #{tpu_custom_call.1} parent=1 // pred_fallthru
      _
    // Predicated region
    $region62: #{tpu_custom_call.1} parent=1 // pred_check
      _
    $region63: #{tpu_custom_call.1} parent=1 // pred_check_branch
      %1431 = sbr.rel (0) target = $region65
    $region64: #{tpu_custom_call.1} parent=1 // pred_region
      %1433 = dma.done [#allocation13], 128
    $region65: #{tpu_custom_call.1} parent=1 // pred_fallthru
      _
    %1434 = vsyncpa [#allocation6], 1
    %1435 = vsyncpa [#allocation9], 1
    %1436 = vsyncpa [#allocation7], 1
    %1437 = vsyncpa [#allocation13], 1

</llo_original>
